<compile_context>
chip_gen: v5e
topology: v5e:2x2
jax: 0.10.0
libtpu: 0.0.40
codegen_flags: <defaults>
</compile_context>

<pallas_src>
import numpy as np
import jax
import jax.numpy as jnp
from jax.experimental import pallas as pl
from jax.experimental.pallas import tpu as pltpu


# --------------------------- Pallas kernel ----------------------------------

def _labels_to_image_kernel(gen_ref, means_ref, stds_ref, gamma_ref,
                            labels_ref, noise_ref, bias_ref, kh_ref, kw_ref,
                            out_ref, xrows_ref, xcols_ref):
    """Fused GMM sample + bias field + min-max norm + gamma + Gaussian blur.

    Per-batch block. Small parameters (generation labels, means, stds,
    exp(gamma)) live in SMEM and are read as scalars; the image work is done
    per channel on (H, W) tiles, the separable blur is batched across channels
    on the MXU in bf16, and the result is stored as one (H, C*W) slab.
    """
    b = pl.program_id(0)
    lbl = labels_ref[0]                                   # (H, W) int32
    H, W = lbl.shape
    C = noise_ref.shape[1]
    L = gen_ref.shape[0]

    kh = kh_ref[...]                                      # (H, H) bf16, hoisted
    kw = kw_ref[...]                                      # (W, W) bf16, hoisted

    # ---- elementwise phase: GMM sample, bias, min-max norm, gamma ----------
    # The label->(mu, sd) lookup is fused into the channel loop so only one
    # mu plane and one sd plane are live at a time (no spilled 2*C planes).
    # TODO(synk): for large L (~30 generation labels) switch the select chain
    # to a one-hot (H*W, L) @ (L, 2C) bf16 MXU matmul.
    for c in range(C):
        mu = jnp.zeros((H, W), jnp.float32)
        sd = jnp.zeros((H, W), jnp.float32)
        for l in range(L):
            match = lbl == gen_ref[l]
            mu = jnp.where(match, means_ref[b, l * C + c], mu)
            sd = jnp.where(match, stds_ref[b, l * C + c], sd)

        # GMM sample (noise pre-generated; see TODO in wrapper) + bias field.
        x = mu + sd * noise_ref[0, c].astype(jnp.float32)
        x = x * bias_ref[0, c].astype(jnp.float32)        # exp(bias) precomputed

        # per-(batch, channel) min-max intensity normalization (block spans the
        # full image, so the reduction is global per (b, c)).
        mn = jnp.min(jnp.min(x, axis=1, keepdims=True), axis=0, keepdims=True)
        mx = jnp.max(jnp.max(x, axis=1, keepdims=True), axis=0, keepdims=True)
        xn = (x - mn) / (mx - mn + 1e-6)

        # gamma augmentation: xn ** exp(gamma); exp(gamma) precomputed host-side.
        xg = jnp.exp(gamma_ref[b, c] * jnp.log(jnp.maximum(xn, 1e-9)))

        # stash channel as bf16 rows for the batched blur matmul
        xrows_ref[c * H:(c + 1) * H, :] = xg.astype(jnp.bfloat16)

    # ---- separable 'same' Gaussian blur, batched across channels on the MXU.
    # Row-wise blur: rows are independent, so all channels in one matmul.
    tmp = jnp.dot(xrows_ref[...], kw, preferred_element_type=jnp.float32)  # (C*H, W)
    # Re-stack channels along columns for the column-wise blur.
    for c in range(C):
        xcols_ref[:, c * W:(c + 1) * W] = tmp[c * H:(c + 1) * H, :].astype(jnp.bfloat16)
    out_ref[0] = jnp.dot(kh, xcols_ref[...],
                         preferred_element_type=jnp.float32)              # (H, C*W)


def fused_labels_to_image(gen_labels, means_flat, stds_flat, gamma_exp,
                          labels_hw, noise, exp_bias, kh, kw):
    """grid=(B,); one fused kernel call per batch element."""
    B, H, W = labels_hw.shape
    C = gamma_exp.shape[-1]
    smem = lambda: pl.BlockSpec(memory_space=pltpu.MemorySpace.SMEM)

    # Explicit scoped-VMEM budget (double-buffered blocks + scratch + headroom),
    # kept well under the 64 MiB physical VMEM of v7x.
    bytes_in = H * W * 4 + 2 * (C * H * W * 2)        # labels + noise + exp(bias)
    bytes_out = H * C * W * 4
    bytes_k = (H * H + W * W) * 2
    bytes_scr = 2 * (C * H * W * 2)
    est = 2 * (bytes_in + bytes_out + bytes_k) + bytes_scr + 8 * H * W * 4
    vmem_limit = int(min(max(2 * est, 4 * 2 ** 20), 48 * 2 ** 20))

    return pl.pallas_call(
        _labels_to_image_kernel,
        out_shape=jax.ShapeDtypeStruct((B, H, C * W), jnp.float32),
        grid=(B,),
        in_specs=[
            smem(),                                            # gen labels (L,)
            smem(),                                            # means      (B, L*C)
            smem(),                                            # stds       (B, L*C)
            smem(),                                            # exp(gamma) (B, C)
            pl.BlockSpec((1, H, W), lambda b: (b, 0, 0)),      # labels
            pl.BlockSpec((1, C, H, W), lambda b: (b, 0, 0, 0)),  # N(0,1) noise bf16
            pl.BlockSpec((1, C, H, W), lambda b: (b, 0, 0, 0)),  # exp(bias) bf16
            pl.BlockSpec((H, H), lambda b: (0, 0)),            # KH Toeplitz bf16
            pl.BlockSpec((W, W), lambda b: (0, 0)),            # KW Toeplitz bf16
        ],
        out_specs=pl.BlockSpec((1, H, C * W), lambda b: (b, 0, 0)),
        scratch_shapes=[
            pltpu.VMEM((C * H, W), jnp.bfloat16),              # row-stacked channels
            pltpu.VMEM((H, C * W), jnp.bfloat16),              # col-stacked channels
        ],
        compiler_params=pltpu.CompilerParams(
            dimension_semantics=("parallel",),
            vmem_limit_bytes=vmem_limit),
    )(gen_labels, means_flat, stds_flat, gamma_exp, labels_hw, noise, exp_bias,
      kh, kw)


# ----------------------------- JAX glue -------------------------------------

def gaussian_toeplitz(n, sigma, radius=3):
    """Band Toeplitz matrix equivalent to 'same' zero-padded 1-D Gaussian conv."""
    idx = jnp.arange(n, dtype=jnp.float32)
    d = idx[:, None] - idx[None, :]
    w = jnp.exp(-0.5 * (d / sigma) ** 2)
    w = jnp.where(jnp.abs(d) <= radius, w, 0.0)
    taps = jnp.arange(-radius, radius + 1, dtype=jnp.float32)
    z = jnp.sum(jnp.exp(-0.5 * (taps / sigma) ** 2))
    return (w / z).astype(jnp.float32)


def random_spatial_deformation(labels, key, scaling_bounds=0.15,
                               rotation_bounds=15.0, shearing_bounds=0.012,
                               nonlin_std=3.0, nonlin_shape_factor=0.04):
    """Random affine + smooth nonlinear deformation, nearest-neighbour resample."""
    B, H, W, _ = labels.shape
    N = H * W
    k_rot, k_scl, k_shr, k_nl = jax.random.split(key, 4)
    theta = jax.random.uniform(k_rot, (B,), minval=-rotation_bounds,
                               maxval=rotation_bounds) * jnp.pi / 180.0
    scale = 1.0 + jax.random.uniform(k_scl, (B, 2), minval=-scaling_bounds,
                                     maxval=scaling_bounds)
    shear = jax.random.uniform(k_shr, (B, 2), minval=-shearing_bounds,
                               maxval=shearing_bounds)
    c, s = jnp.cos(theta), jnp.sin(theta)
    ones, zeros = jnp.ones((B,), jnp.float32), jnp.zeros((B,), jnp.float32)
    R = jnp.stack([jnp.stack([c, -s], -1), jnp.stack([s, c], -1)], -2)
    Sh = jnp.stack([jnp.stack([ones, shear[:, 0]], -1),
                    jnp.stack([shear[:, 1], ones], -1)], -2)
    Sc = jnp.stack([jnp.stack([scale[:, 0], zeros], -1),
                    jnp.stack([zeros, scale[:, 1]], -1)], -2)
    A = R @ Sh @ Sc
    det = A[:, 0, 0] * A[:, 1, 1] - A[:, 0, 1] * A[:, 1, 0]
    A_inv = jnp.stack([jnp.stack([A[:, 1, 1], -A[:, 0, 1]], -1),
                       jnp.stack([-A[:, 1, 0], A[:, 0, 0]], -1)], -2)
    A_inv = A_inv / det[:, None, None]

    cy, cx = (H - 1) / 2.0, (W - 1) / 2.0
    gy, gx = jnp.meshgrid(jnp.arange(H, dtype=jnp.float32) - cy,
                          jnp.arange(W, dtype=jnp.float32) - cx, indexing='ij')
    grid = jnp.stack([gy, gx], 0).reshape(2, N)
    src = jnp.einsum('bij,jn->bin', A_inv, grid)           # (B, 2, N)

    # TODO(synk): SVF integration (vecInt) of the nonlinear field is
    # approximated by a direct smooth displacement field.
    sh_s = (max(2, int(np.ceil(H * nonlin_shape_factor))),
            max(2, int(np.ceil(W * nonlin_shape_factor))))
    field_small = jax.random.normal(k_nl, (B,) + sh_s + (2,)) * nonlin_std
    field = jax.image.resize(field_small, (B, H, W, 2), method='linear')
    src = src + jnp.transpose(field.reshape(B, N, 2), (0, 2, 1))

    sy = jnp.clip(jnp.round(src[:, 0] + cy), 0, H - 1).astype(jnp.int32)
    sx = jnp.clip(jnp.round(src[:, 1] + cx), 0, W - 1).astype(jnp.int32)
    warped = jax.vmap(lambda lab, y, x: lab[y, x])(labels[..., 0], sy, sx)
    return warped.reshape(B, H, W, 1).astype(jnp.int32)


def labels_to_image_forward(labels, means, stds, gen_labels, key,
                            blur_range=1.15, bias_field_std=0.3,
                            bias_shape_factor=0.025, gamma_std=0.1):
    """Full forward pass of LabelsToImageModel (2-D)."""
    B, H, W, _ = labels.shape
    L = means.shape[1]
    C = means.shape[-1]
    k_def, k_noise, k_bias, k_gamma, k_blur = jax.random.split(key, 5)

    # 1) random spatial deformation of label maps (data-dependent gather -> glue)
    labels = random_spatial_deformation(labels, k_def)

    # GMM noise, channel-major (B, C, H, W), bf16 to halve HBM traffic.
    # TODO(synk): in-kernel pltpu.prng_* would avoid this HBM read entirely but
    # has no CPU-interpret lowering, so the noise is drawn with jax.random.
    noise = jax.random.normal(k_noise, (B, C, H, W)).astype(jnp.bfloat16)

    # Bias field: generated channel-major (B, C, h, w), upsampled, exp() applied
    # here (tiny XLA op fused into the resize output) so the kernel only multiplies.
    sh_b = (max(2, int(np.ceil(H * bias_shape_factor))),
            max(2, int(np.ceil(W * bias_shape_factor))))
    bias_small = jax.random.normal(k_bias, (B, C) + sh_b) * bias_field_std
    exp_bias = jnp.exp(jax.image.resize(bias_small, (B, C, H, W),
                                        method='linear')).astype(jnp.bfloat16)

    # Gamma augmentation parameters (exp() hoisted: tiny (B, C) op).
    gamma = jax.random.normal(k_gamma, (B, C)) * gamma_std
    gamma_exp = jnp.exp(gamma).astype(jnp.float32)

    # Dynamic Gaussian blur sigma and its Toeplitz matrices (bf16 MXU operands).
    sigma = 0.5 * jax.random.uniform(k_blur, (), minval=1.0 / blur_range,
                                     maxval=blur_range)
    kh = gaussian_toeplitz(H, sigma).astype(jnp.bfloat16)
    kw = gaussian_toeplitz(W, sigma).astype(jnp.bfloat16)

    # 2-4) GMM sampling + bias + intensity + gamma + blur: one fused kernel.
    image_slab = fused_labels_to_image(
        gen_labels.reshape(-1).astype(jnp.int32),
        means.reshape(B, L * C).astype(jnp.float32),
        stds.reshape(B, L * C).astype(jnp.float32),
        gamma_exp,
        labels[..., 0].astype(jnp.int32),
        noise, exp_bias, kh, kw)                            # (B, H, C*W)

    image_out = jnp.transpose(image_slab.reshape(B, H, C, W),
                              (0, 1, 3, 2))                 # (B, H, W, C)
    return image_out, labels


# ------------------------------ main ----------------------------------------

if __name__ == "__main__":
    key = jax.random.PRNGKey(0)
    B, H, W, C = 2, 16, 16, 2        # batch, spatial, n_channels
    L = 8                            # number of generation labels
    gen_label_values = jnp.array([[0, 10, 20, 30, 40, 50, 60, 70]],
                                 dtype=jnp.int32)          # (1, L)

    k_lab, k_mu, k_sd, k_fwd = jax.random.split(key, 4)
    lab_idx = jax.random.randint(k_lab, (B, H, W), 0, L)
    labels = gen_label_values[0][lab_idx][..., None].astype(jnp.int32)  # (B,H,W,1)
    means = jax.random.uniform(k_mu, (B, L, C), minval=25.0, maxval=225.0)
    stds = jax.random.uniform(k_sd, (B, L, C), minval=5.0, maxval=25.0)

    image, out_labels = labels_to_image_forward(labels, means, stds,
                                                gen_label_values, k_fwd)
    jax.block_until_ready((image, out_labels))

    assert image.shape == (B, H, W, C) and image.dtype == jnp.float32
    assert out_labels.shape == (B, H, W, 1)
    assert bool(jnp.all(jnp.isfinite(image)))
    print("KERNEL_OK")
</pallas_src>

<mosaic_0001>
module attributes {stable_mosaic.version = 11 : i64} {
  func.func @_labels_to_image_kernel(%arg0: i32, %arg1: memref<8xi32, #tpu.memory_space<smem>>, %arg2: memref<2x16xf32, #tpu.memory_space<smem>>, %arg3: memref<2x16xf32, #tpu.memory_space<smem>>, %arg4: memref<2x2xf32, #tpu.memory_space<smem>>, %arg5: memref<1x16x16xi32, #tpu.memory_space<vmem>>, %arg6: memref<1x2x16x16xbf16, #tpu.memory_space<vmem>>, %arg7: memref<1x2x16x16xbf16, #tpu.memory_space<vmem>>, %arg8: memref<16x16xbf16, #tpu.memory_space<vmem>>, %arg9: memref<16x16xbf16, #tpu.memory_space<vmem>>, %arg10: memref<1x16x32xf32, #tpu.memory_space<vmem>>, %arg11: memref<32x16xbf16, #tpu.memory_space<vmem>>, %arg12: memref<16x32xbf16, #tpu.memory_space<vmem>>) attributes {dimension_semantics = [#tpu.dimension_semantics<parallel>], iteration_bounds = array<i64: 2>, scalar_prefetch = 0 : i64, scratch_operands = 2 : i64, tpu.core_type = #tpu.core_type<tc>, window_params = [{transform_indices = @transform_0, window_bounds = array<i64: 8>}, {transform_indices = @transform_1, window_bounds = array<i64: 2, 16>}, {transform_indices = @transform_2, window_bounds = array<i64: 2, 16>}, {transform_indices = @transform_3, window_bounds = array<i64: 2, 2>}, {transform_indices = @transform_4, window_bounds = array<i64: 1, 16, 16>}, {transform_indices = @transform_5, window_bounds = array<i64: 1, 2, 16, 16>}, {transform_indices = @transform_6, window_bounds = array<i64: 1, 2, 16, 16>}, {pipeline_mode = #tpu.pipeline_mode<synchronous>, transform_indices = @transform_7, window_bounds = array<i64: 16, 16>}, {pipeline_mode = #tpu.pipeline_mode<synchronous>, transform_indices = @transform_8, window_bounds = array<i64: 16, 16>}, {transform_indices = @transform_9, window_bounds = array<i64: 1, 16, 32>}]} {
    %c0 = arith.constant 0 : index
    %c0_0 = arith.constant 0 : index
    %c0_1 = arith.constant 0 : index
    %0 = vector.load %arg5[%c0, %c0_0, %c0_1] : memref<1x16x16xi32, #tpu.memory_space<vmem>>, vector<1x16x16xi32>
    %1 = vector.shape_cast %0 : vector<1x16x16xi32> to vector<16x16xi32>
    %c0_2 = arith.constant 0 : index
    %c0_3 = arith.constant 0 : index
    %2 = vector.load %arg8[%c0_2, %c0_3] : memref<16x16xbf16, #tpu.memory_space<vmem>>, vector<16x16xbf16>
    %c0_4 = arith.constant 0 : index
    %c0_5 = arith.constant 0 : index
    %3 = vector.load %arg9[%c0_4, %c0_5] : memref<16x16xbf16, #tpu.memory_space<vmem>>, vector<16x16xbf16>
    %cst = arith.constant 0.000000e+00 : f32
    %4 = vector.broadcast %cst : f32 to vector<16x16xf32>
    %cst_6 = arith.constant 0.000000e+00 : f32
    %5 = vector.broadcast %cst_6 : f32 to vector<16x16xf32>
    %c0_7 = arith.constant 0 : index
    %6 = memref.load %arg1[%c0_7] : memref<8xi32, #tpu.memory_space<smem>>
    %7 = vector.broadcast %6 : i32 to vector<16x16xi32>
    %8 = arith.cmpi eq, %1, %7 : vector<16x16xi32>
    %9 = arith.index_cast %arg0 : i32 to index
    %c0_8 = arith.constant 0 : index
    %10 = memref.load %arg2[%9, %c0_8] : memref<2x16xf32, #tpu.memory_space<smem>>
    %11 = vector.broadcast %10 : f32 to vector<16x16xf32>
    %12 = arith.select %8, %11, %4 : vector<16x16xi1>, vector<16x16xf32>
    %13 = arith.index_cast %arg0 : i32 to index
    %c0_9 = arith.constant 0 : index
    %14 = memref.load %arg3[%13, %c0_9] : memref<2x16xf32, #tpu.memory_space<smem>>
    %15 = vector.broadcast %14 : f32 to vector<16x16xf32>
    %16 = arith.select %8, %15, %5 : vector<16x16xi1>, vector<16x16xf32>
    %c1 = arith.constant 1 : index
    %17 = memref.load %arg1[%c1] : memref<8xi32, #tpu.memory_space<smem>>
    %18 = vector.broadcast %17 : i32 to vector<16x16xi32>
    %19 = arith.cmpi eq, %1, %18 : vector<16x16xi32>
    %20 = arith.index_cast %arg0 : i32 to index
    %c2 = arith.constant 2 : index
    %21 = memref.load %arg2[%20, %c2] : memref<2x16xf32, #tpu.memory_space<smem>>
    %22 = vector.broadcast %21 : f32 to vector<16x16xf32>
    %23 = arith.select %19, %22, %12 : vector<16x16xi1>, vector<16x16xf32>
    %24 = arith.index_cast %arg0 : i32 to index
    %c2_10 = arith.constant 2 : index
    %25 = memref.load %arg3[%24, %c2_10] : memref<2x16xf32, #tpu.memory_space<smem>>
    %26 = vector.broadcast %25 : f32 to vector<16x16xf32>
    %27 = arith.select %19, %26, %16 : vector<16x16xi1>, vector<16x16xf32>
    %c2_11 = arith.constant 2 : index
    %28 = memref.load %arg1[%c2_11] : memref<8xi32, #tpu.memory_space<smem>>
    %29 = vector.broadcast %28 : i32 to vector<16x16xi32>
    %30 = arith.cmpi eq, %1, %29 : vector<16x16xi32>
    %31 = arith.index_cast %arg0 : i32 to index
    %c4 = arith.constant 4 : index
    %32 = memref.load %arg2[%31, %c4] : memref<2x16xf32, #tpu.memory_space<smem>>
    %33 = vector.broadcast %32 : f32 to vector<16x16xf32>
    %34 = arith.select %30, %33, %23 : vector<16x16xi1>, vector<16x16xf32>
    %35 = arith.index_cast %arg0 : i32 to index
    %c4_12 = arith.constant 4 : index
    %36 = memref.load %arg3[%35, %c4_12] : memref<2x16xf32, #tpu.memory_space<smem>>
    %37 = vector.broadcast %36 : f32 to vector<16x16xf32>
    %38 = arith.select %30, %37, %27 : vector<16x16xi1>, vector<16x16xf32>
    %c3 = arith.constant 3 : index
    %39 = memref.load %arg1[%c3] : memref<8xi32, #tpu.memory_space<smem>>
    %40 = vector.broadcast %39 : i32 to vector<16x16xi32>
    %41 = arith.cmpi eq, %1, %40 : vector<16x16xi32>
    %42 = arith.index_cast %arg0 : i32 to index
    %c6 = arith.constant 6 : index
    %43 = memref.load %arg2[%42, %c6] : memref<2x16xf32, #tpu.memory_space<smem>>
    %44 = vector.broadcast %43 : f32 to vector<16x16xf32>
    %45 = arith.select %41, %44, %34 : vector<16x16xi1>, vector<16x16xf32>
    %46 = arith.index_cast %arg0 : i32 to index
    %c6_13 = arith.constant 6 : index
    %47 = memref.load %arg3[%46, %c6_13] : memref<2x16xf32, #tpu.memory_space<smem>>
    %48 = vector.broadcast %47 : f32 to vector<16x16xf32>
    %49 = arith.select %41, %48, %38 : vector<16x16xi1>, vector<16x16xf32>
    %c4_14 = arith.constant 4 : index
    %50 = memref.load %arg1[%c4_14] : memref<8xi32, #tpu.memory_space<smem>>
    %51 = vector.broadcast %50 : i32 to vector<16x16xi32>
    %52 = arith.cmpi eq, %1, %51 : vector<16x16xi32>
    %53 = arith.index_cast %arg0 : i32 to index
    %c8 = arith.constant 8 : index
    %54 = memref.load %arg2[%53, %c8] : memref<2x16xf32, #tpu.memory_space<smem>>
    %55 = vector.broadcast %54 : f32 to vector<16x16xf32>
    %56 = arith.select %52, %55, %45 : vector<16x16xi1>, vector<16x16xf32>
    %57 = arith.index_cast %arg0 : i32 to index
    %c8_15 = arith.constant 8 : index
    %58 = memref.load %arg3[%57, %c8_15] : memref<2x16xf32, #tpu.memory_space<smem>>
    %59 = vector.broadcast %58 : f32 to vector<16x16xf32>
    %60 = arith.select %52, %59, %49 : vector<16x16xi1>, vector<16x16xf32>
    %c5 = arith.constant 5 : index
    %61 = memref.load %arg1[%c5] : memref<8xi32, #tpu.memory_space<smem>>
    %62 = vector.broadcast %61 : i32 to vector<16x16xi32>
    %63 = arith.cmpi eq, %1, %62 : vector<16x16xi32>
    %64 = arith.index_cast %arg0 : i32 to index
    %c10 = arith.constant 10 : index
    %65 = memref.load %arg2[%64, %c10] : memref<2x16xf32, #tpu.memory_space<smem>>
    %66 = vector.broadcast %65 : f32 to vector<16x16xf32>
    %67 = arith.select %63, %66, %56 : vector<16x16xi1>, vector<16x16xf32>
    %68 = arith.index_cast %arg0 : i32 to index
    %c10_16 = arith.constant 10 : index
    %69 = memref.load %arg3[%68, %c10_16] : memref<2x16xf32, #tpu.memory_space<smem>>
    %70 = vector.broadcast %69 : f32 to vector<16x16xf32>
    %71 = arith.select %63, %70, %60 : vector<16x16xi1>, vector<16x16xf32>
    %c6_17 = arith.constant 6 : index
    %72 = memref.load %arg1[%c6_17] : memref<8xi32, #tpu.memory_space<smem>>
    %73 = vector.broadcast %72 : i32 to vector<16x16xi32>
    %74 = arith.cmpi eq, %1, %73 : vector<16x16xi32>
    %75 = arith.index_cast %arg0 : i32 to index
    %c12 = arith.constant 12 : index
    %76 = memref.load %arg2[%75, %c12] : memref<2x16xf32, #tpu.memory_space<smem>>
    %77 = vector.broadcast %76 : f32 to vector<16x16xf32>
    %78 = arith.select %74, %77, %67 : vector<16x16xi1>, vector<16x16xf32>
    %79 = arith.index_cast %arg0 : i32 to index
    %c12_18 = arith.constant 12 : index
    %80 = memref.load %arg3[%79, %c12_18] : memref<2x16xf32, #tpu.memory_space<smem>>
    %81 = vector.broadcast %80 : f32 to vector<16x16xf32>
    %82 = arith.select %74, %81, %71 : vector<16x16xi1>, vector<16x16xf32>
    %c7 = arith.constant 7 : index
    %83 = memref.load %arg1[%c7] : memref<8xi32, #tpu.memory_space<smem>>
    %84 = vector.broadcast %83 : i32 to vector<16x16xi32>
    %85 = arith.cmpi eq, %1, %84 : vector<16x16xi32>
    %86 = arith.index_cast %arg0 : i32 to index
    %c14 = arith.constant 14 : index
    %87 = memref.load %arg2[%86, %c14] : memref<2x16xf32, #tpu.memory_space<smem>>
    %88 = vector.broadcast %87 : f32 to vector<16x16xf32>
    %89 = arith.select %85, %88, %78 : vector<16x16xi1>, vector<16x16xf32>
    %90 = arith.index_cast %arg0 : i32 to index
    %c14_19 = arith.constant 14 : index
    %91 = memref.load %arg3[%90, %c14_19] : memref<2x16xf32, #tpu.memory_space<smem>>
    %92 = vector.broadcast %91 : f32 to vector<16x16xf32>
    %93 = arith.select %85, %92, %82 : vector<16x16xi1>, vector<16x16xf32>
    %c0_20 = arith.constant 0 : index
    %c0_21 = arith.constant 0 : index
    %c0_22 = arith.constant 0 : index
    %c0_23 = arith.constant 0 : index
    %94 = vector.load %arg6[%c0_20, %c0_21, %c0_22, %c0_23] : memref<1x2x16x16xbf16, #tpu.memory_space<vmem>>, vector<1x1x16x16xbf16>
    %95 = vector.shape_cast %94 : vector<1x1x16x16xbf16> to vector<16x16xbf16>
    %96 = arith.extf %95 : vector<16x16xbf16> to vector<16x16xf32>
    %97 = arith.mulf %93, %96 : vector<16x16xf32>
    %98 = arith.addf %89, %97 : vector<16x16xf32>
    %c0_24 = arith.constant 0 : index
    %c0_25 = arith.constant 0 : index
    %c0_26 = arith.constant 0 : index
    %c0_27 = arith.constant 0 : index
    %99 = vector.load %arg7[%c0_24, %c0_25, %c0_26, %c0_27] : memref<1x2x16x16xbf16, #tpu.memory_space<vmem>>, vector<1x1x16x16xbf16>
    %100 = vector.shape_cast %99 : vector<1x1x16x16xbf16> to vector<16x16xbf16>
    %101 = arith.extf %100 : vector<16x16xbf16> to vector<16x16xf32>
    %102 = arith.mulf %98, %101 : vector<16x16xf32>
    %cst_28 = arith.constant dense<0x7F800000> : vector<16xf32>
    %103 = vector.multi_reduction <minimumf>, %102, %cst_28 [1] : vector<16x16xf32> to vector<16xf32>
    %104 = vector.shape_cast %103 : vector<16xf32> to vector<16x1xf32>
    %cst_29 = arith.constant dense<0x7F800000> : vector<1xf32>
    %105 = vector.multi_reduction <minimumf>, %104, %cst_29 [0] : vector<16x1xf32> to vector<1xf32>
    %106 = vector.shape_cast %105 : vector<1xf32> to vector<1x1xf32>
    %cst_30 = arith.constant dense<0xFF800000> : vector<16xf32>
    %107 = vector.multi_reduction <maximumf>, %102, %cst_30 [1] : vector<16x16xf32> to vector<16xf32>
    %108 = vector.shape_cast %107 : vector<16xf32> to vector<16x1xf32>
    %cst_31 = arith.constant dense<0xFF800000> : vector<1xf32>
    %109 = vector.multi_reduction <maximumf>, %108, %cst_31 [0] : vector<16x1xf32> to vector<1xf32>
    %110 = vector.shape_cast %109 : vector<1xf32> to vector<1x1xf32>
    %111 = vector.broadcast %106 : vector<1x1xf32> to vector<16x16xf32>
    %112 = arith.subf %102, %111 : vector<16x16xf32>
    %113 = arith.subf %110, %106 : vector<1x1xf32>
    %cst_32 = arith.constant 9.99999997E-7 : f32
    %114 = vector.broadcast %cst_32 : f32 to vector<1x1xf32>
    %115 = arith.addf %113, %114 : vector<1x1xf32>
    %116 = vector.broadcast %115 : vector<1x1xf32> to vector<16x16xf32>
    %117 = arith.divf %112, %116 : vector<16x16xf32>
    %118 = arith.index_cast %arg0 : i32 to index
    %c0_33 = arith.constant 0 : index
    %119 = memref.load %arg4[%118, %c0_33] : memref<2x2xf32, #tpu.memory_space<smem>>
    %cst_34 = arith.constant 9.99999971E-10 : f32
    %120 = vector.broadcast %cst_34 : f32 to vector<16x16xf32>
    %121 = arith.maximumf %117, %120 : vector<16x16xf32>
    %122 = math.log %121 : vector<16x16xf32>
    %123 = vector.broadcast %119 : f32 to vector<16x16xf32>
    %124 = arith.mulf %123, %122 : vector<16x16xf32>
    %125 = math.exp %124 : vector<16x16xf32>
    %126 = arith.truncf %125 : vector<16x16xf32> to vector<16x16xbf16>
    %c0_35 = arith.constant 0 : index
    %c0_36 = arith.constant 0 : index
    %127 = vector.load %arg11[%c0_35, %c0_36] : memref<32x16xbf16, #tpu.memory_space<vmem>>, vector<16x16xbf16>
    tpu.vector_store %arg11[%c0_35, %c0_36], %126 {strides = array<i32>} : memref<32x16xbf16, #tpu.memory_space<vmem>>, vector<16x16xbf16>,
    %cst_37 = arith.constant 0.000000e+00 : f32
    %128 = vector.broadcast %cst_37 : f32 to vector<16x16xf32>
    %cst_38 = arith.constant 0.000000e+00 : f32
    %129 = vector.broadcast %cst_38 : f32 to vector<16x16xf32>
    %c0_39 = arith.constant 0 : index
    %130 = memref.load %arg1[%c0_39] : memref<8xi32, #tpu.memory_space<smem>>
    %131 = vector.broadcast %130 : i32 to vector<16x16xi32>
    %132 = arith.cmpi eq, %1, %131 : vector<16x16xi32>
    %133 = arith.index_cast %arg0 : i32 to index
    %c1_40 = arith.constant 1 : index
    %134 = memref.load %arg2[%133, %c1_40] : memref<2x16xf32, #tpu.memory_space<smem>>
    %135 = vector.broadcast %134 : f32 to vector<16x16xf32>
    %136 = arith.select %132, %135, %128 : vector<16x16xi1>, vector<16x16xf32>
    %137 = arith.index_cast %arg0 : i32 to index
    %c1_41 = arith.constant 1 : index
    %138 = memref.load %arg3[%137, %c1_41] : memref<2x16xf32, #tpu.memory_space<smem>>
    %139 = vector.broadcast %138 : f32 to vector<16x16xf32>
    %140 = arith.select %132, %139, %129 : vector<16x16xi1>, vector<16x16xf32>
    %c1_42 = arith.constant 1 : index
    %141 = memref.load %arg1[%c1_42] : memref<8xi32, #tpu.memory_space<smem>>
    %142 = vector.broadcast %141 : i32 to vector<16x16xi32>
    %143 = arith.cmpi eq, %1, %142 : vector<16x16xi32>
    %144 = arith.index_cast %arg0 : i32 to index
    %c3_43 = arith.constant 3 : index
    %145 = memref.load %arg2[%144, %c3_43] : memref<2x16xf32, #tpu.memory_space<smem>>
    %146 = vector.broadcast %145 : f32 to vector<16x16xf32>
    %147 = arith.select %143, %146, %136 : vector<16x16xi1>, vector<16x16xf32>
    %148 = arith.index_cast %arg0 : i32 to index
    %c3_44 = arith.constant 3 : index
    %149 = memref.load %arg3[%148, %c3_44] : memref<2x16xf32, #tpu.memory_space<smem>>
    %150 = vector.broadcast %149 : f32 to vector<16x16xf32>
    %151 = arith.select %143, %150, %140 : vector<16x16xi1>, vector<16x16xf32>
    %c2_45 = arith.constant 2 : index
    %152 = memref.load %arg1[%c2_45] : memref<8xi32, #tpu.memory_space<smem>>
    %153 = vector.broadcast %152 : i32 to vector<16x16xi32>
    %154 = arith.cmpi eq, %1, %153 : vector<16x16xi32>
    %155 = arith.index_cast %arg0 : i32 to index
    %c5_46 = arith.constant 5 : index
    %156 = memref.load %arg2[%155, %c5_46] : memref<2x16xf32, #tpu.memory_space<smem>>
    %157 = vector.broadcast %156 : f32 to vector<16x16xf32>
    %158 = arith.select %154, %157, %147 : vector<16x16xi1>, vector<16x16xf32>
    %159 = arith.index_cast %arg0 : i32 to index
    %c5_47 = arith.constant 5 : index
    %160 = memref.load %arg3[%159, %c5_47] : memref<2x16xf32, #tpu.memory_space<smem>>
    %161 = vector.broadcast %160 : f32 to vector<16x16xf32>
    %162 = arith.select %154, %161, %151 : vector<16x16xi1>, vector<16x16xf32>
    %c3_48 = arith.constant 3 : index
    %163 = memref.load %arg1[%c3_48] : memref<8xi32, #tpu.memory_space<smem>>
    %164 = vector.broadcast %163 : i32 to vector<16x16xi32>
    %165 = arith.cmpi eq, %1, %164 : vector<16x16xi32>
    %166 = arith.index_cast %arg0 : i32 to index
    %c7_49 = arith.constant 7 : index
    %167 = memref.load %arg2[%166, %c7_49] : memref<2x16xf32, #tpu.memory_space<smem>>
    %168 = vector.broadcast %167 : f32 to vector<16x16xf32>
    %169 = arith.select %165, %168, %158 : vector<16x16xi1>, vector<16x16xf32>
    %170 = arith.index_cast %arg0 : i32 to index
    %c7_50 = arith.constant 7 : index
    %171 = memref.load %arg3[%170, %c7_50] : memref<2x16xf32, #tpu.memory_space<smem>>
    %172 = vector.broadcast %171 : f32 to vector<16x16xf32>
    %173 = arith.select %165, %172, %162 : vector<16x16xi1>, vector<16x16xf32>
    %c4_51 = arith.constant 4 : index
    %174 = memref.load %arg1[%c4_51] : memref<8xi32, #tpu.memory_space<smem>>
    %175 = vector.broadcast %174 : i32 to vector<16x16xi32>
    %176 = arith.cmpi eq, %1, %175 : vector<16x16xi32>
    %177 = arith.index_cast %arg0 : i32 to index
    %c9 = arith.constant 9 : index
    %178 = memref.load %arg2[%177, %c9] : memref<2x16xf32, #tpu.memory_space<smem>>
    %179 = vector.broadcast %178 : f32 to vector<16x16xf32>
    %180 = arith.select %176, %179, %169 : vector<16x16xi1>, vector<16x16xf32>
    %181 = arith.index_cast %arg0 : i32 to index
    %c9_52 = arith.constant 9 : index
    %182 = memref.load %arg3[%181, %c9_52] : memref<2x16xf32, #tpu.memory_space<smem>>
    %183 = vector.broadcast %182 : f32 to vector<16x16xf32>
    %184 = arith.select %176, %183, %173 : vector<16x16xi1>, vector<16x16xf32>
    %c5_53 = arith.constant 5 : index
    %185 = memref.load %arg1[%c5_53] : memref<8xi32, #tpu.memory_space<smem>>
    %186 = vector.broadcast %185 : i32 to vector<16x16xi32>
    %187 = arith.cmpi eq, %1, %186 : vector<16x16xi32>
    %188 = arith.index_cast %arg0 : i32 to index
    %c11 = arith.constant 11 : index
    %189 = memref.load %arg2[%188, %c11] : memref<2x16xf32, #tpu.memory_space<smem>>
    %190 = vector.broadcast %189 : f32 to vector<16x16xf32>
    %191 = arith.select %187, %190, %180 : vector<16x16xi1>, vector<16x16xf32>
    %192 = arith.index_cast %arg0 : i32 to index
    %c11_54 = arith.constant 11 : index
    %193 = memref.load %arg3[%192, %c11_54] : memref<2x16xf32, #tpu.memory_space<smem>>
    %194 = vector.broadcast %193 : f32 to vector<16x16xf32>
    %195 = arith.select %187, %194, %184 : vector<16x16xi1>, vector<16x16xf32>
    %c6_55 = arith.constant 6 : index
    %196 = memref.load %arg1[%c6_55] : memref<8xi32, #tpu.memory_space<smem>>
    %197 = vector.broadcast %196 : i32 to vector<16x16xi32>
    %198 = arith.cmpi eq, %1, %197 : vector<16x16xi32>
    %199 = arith.index_cast %arg0 : i32 to index
    %c13 = arith.constant 13 : index
    %200 = memref.load %arg2[%199, %c13] : memref<2x16xf32, #tpu.memory_space<smem>>
    %201 = vector.broadcast %200 : f32 to vector<16x16xf32>
    %202 = arith.select %198, %201, %191 : vector<16x16xi1>, vector<16x16xf32>
    %203 = arith.index_cast %arg0 : i32 to index
    %c13_56 = arith.constant 13 : index
    %204 = memref.load %arg3[%203, %c13_56] : memref<2x16xf32, #tpu.memory_space<smem>>
    %205 = vector.broadcast %204 : f32 to vector<16x16xf32>
    %206 = arith.select %198, %205, %195 : vector<16x16xi1>, vector<16x16xf32>
    %c7_57 = arith.constant 7 : index
    %207 = memref.load %arg1[%c7_57] : memref<8xi32, #tpu.memory_space<smem>>
    %208 = vector.broadcast %207 : i32 to vector<16x16xi32>
    %209 = arith.cmpi eq, %1, %208 : vector<16x16xi32>
    %210 = arith.index_cast %arg0 : i32 to index
    %c15 = arith.constant 15 : index
    %211 = memref.load %arg2[%210, %c15] : memref<2x16xf32, #tpu.memory_space<smem>>
    %212 = vector.broadcast %211 : f32 to vector<16x16xf32>
    %213 = arith.select %209, %212, %202 : vector<16x16xi1>, vector<16x16xf32>
    %214 = arith.index_cast %arg0 : i32 to index
    %c15_58 = arith.constant 15 : index
    %215 = memref.load %arg3[%214, %c15_58] : memref<2x16xf32, #tpu.memory_space<smem>>
    %216 = vector.broadcast %215 : f32 to vector<16x16xf32>
    %217 = arith.select %209, %216, %206 : vector<16x16xi1>, vector<16x16xf32>
    %c0_59 = arith.constant 0 : index
    %c1_60 = arith.constant 1 : index
    %c0_61 = arith.constant 0 : index
    %c0_62 = arith.constant 0 : index
    %218 = vector.load %arg6[%c0_59, %c1_60, %c0_61, %c0_62] : memref<1x2x16x16xbf16, #tpu.memory_space<vmem>>, vector<1x1x16x16xbf16>
    %219 = vector.shape_cast %218 : vector<1x1x16x16xbf16> to vector<16x16xbf16>
    %220 = arith.extf %219 : vector<16x16xbf16> to vector<16x16xf32>
    %221 = arith.mulf %217, %220 : vector<16x16xf32>
    %222 = arith.addf %213, %221 : vector<16x16xf32>
    %c0_63 = arith.constant 0 : index
    %c1_64 = arith.constant 1 : index
    %c0_65 = arith.constant 0 : index
    %c0_66 = arith.constant 0 : index
    %223 = vector.load %arg7[%c0_63, %c1_64, %c0_65, %c0_66] : memref<1x2x16x16xbf16, #tpu.memory_space<vmem>>, vector<1x1x16x16xbf16>
    %224 = vector.shape_cast %223 : vector<1x1x16x16xbf16> to vector<16x16xbf16>
    %225 = arith.extf %224 : vector<16x16xbf16> to vector<16x16xf32>
    %226 = arith.mulf %222, %225 : vector<16x16xf32>
    %cst_67 = arith.constant dense<0x7F800000> : vector<16xf32>
    %227 = vector.multi_reduction <minimumf>, %226, %cst_67 [1] : vector<16x16xf32> to vector<16xf32>
    %228 = vector.shape_cast %227 : vector<16xf32> to vector<16x1xf32>
    %cst_68 = arith.constant dense<0x7F800000> : vector<1xf32>
    %229 = vector.multi_reduction <minimumf>, %228, %cst_68 [0] : vector<16x1xf32> to vector<1xf32>
    %230 = vector.shape_cast %229 : vector<1xf32> to vector<1x1xf32>
    %cst_69 = arith.constant dense<0xFF800000> : vector<16xf32>
    %231 = vector.multi_reduction <maximumf>, %226, %cst_69 [1] : vector<16x16xf32> to vector<16xf32>
    %232 = vector.shape_cast %231 : vector<16xf32> to vector<16x1xf32>
    %cst_70 = arith.constant dense<0xFF800000> : vector<1xf32>
    %233 = vector.multi_reduction <maximumf>, %232, %cst_70 [0] : vector<16x1xf32> to vector<1xf32>
    %234 = vector.shape_cast %233 : vector<1xf32> to vector<1x1xf32>
    %235 = vector.broadcast %230 : vector<1x1xf32> to vector<16x16xf32>
    %236 = arith.subf %226, %235 : vector<16x16xf32>
    %237 = arith.subf %234, %230 : vector<1x1xf32>
    %cst_71 = arith.constant 9.99999997E-7 : f32
    %238 = vector.broadcast %cst_71 : f32 to vector<1x1xf32>
    %239 = arith.addf %237, %238 : vector<1x1xf32>
    %240 = vector.broadcast %239 : vector<1x1xf32> to vector<16x16xf32>
    %241 = arith.divf %236, %240 : vector<16x16xf32>
    %242 = arith.index_cast %arg0 : i32 to index
    %c1_72 = arith.constant 1 : index
    %243 = memref.load %arg4[%242, %c1_72] : memref<2x2xf32, #tpu.memory_space<smem>>
    %cst_73 = arith.constant 9.99999971E-10 : f32
    %244 = vector.broadcast %cst_73 : f32 to vector<16x16xf32>
    %245 = arith.maximumf %241, %244 : vector<16x16xf32>
    %246 = math.log %245 : vector<16x16xf32>
    %247 = vector.broadcast %243 : f32 to vector<16x16xf32>
    %248 = arith.mulf %247, %246 : vector<16x16xf32>
    %249 = math.exp %248 : vector<16x16xf32>
    %250 = arith.truncf %249 : vector<16x16xf32> to vector<16x16xbf16>
    %c16 = arith.constant 16 : index
    %c0_74 = arith.constant 0 : index
    %251 = vector.load %arg11[%c16, %c0_74] : memref<32x16xbf16, #tpu.memory_space<vmem>>, vector<16x16xbf16>
    tpu.vector_store %arg11[%c16, %c0_74], %250 {strides = array<i32>} : memref<32x16xbf16, #tpu.memory_space<vmem>>, vector<16x16xbf16>,
    %c0_75 = arith.constant 0 : index
    %c0_76 = arith.constant 0 : index
    %252 = vector.load %arg11[%c0_75, %c0_76] : memref<32x16xbf16, #tpu.memory_space<vmem>>, vector<32x16xbf16>
    %cst_77 = arith.constant dense<0.000000e+00> : vector<32x16xf32>
    %253 = tpu.matmul %252, %3, %cst_77 {dimension_numbers = #tpu.dot_dimension_numbers<[1], [0], [0], [1], [0, 0, 1, 1], [], []>} : vector<32x16xbf16>, vector<16x16xbf16>, vector<32x16xf32> -> vector<32x16xf32>
    %254 = vector.extract_strided_slice %253 {offsets = [0, 0], sizes = [16, 16], strides = [1, 1]} : vector<32x16xf32> to vector<16x16xf32>
    %255 = arith.truncf %254 : vector<16x16xf32> to vector<16x16xbf16>
    %c0_78 = arith.constant 0 : index
    %c0_79 = arith.constant 0 : index
    %256 = vector.load %arg12[%c0_78, %c0_79] : memref<16x32xbf16, #tpu.memory_space<vmem>>, vector<16x16xbf16>
    tpu.vector_store %arg12[%c0_78, %c0_79], %255 {strides = array<i32>} : memref<16x32xbf16, #tpu.memory_space<vmem>>, vector<16x16xbf16>,
    %257 = vector.extract_strided_slice %253 {offsets = [16, 0], sizes = [16, 16], strides = [1, 1]} : vector<32x16xf32> to vector<16x16xf32>
    %258 = arith.truncf %257 : vector<16x16xf32> to vector<16x16xbf16>
    %c0_80 = arith.constant 0 : index
    %c16_81 = arith.constant 16 : index
    %259 = vector.load %arg12[%c0_80, %c16_81] : memref<16x32xbf16, #tpu.memory_space<vmem>>, vector<16x16xbf16>
    tpu.vector_store %arg12[%c0_80, %c16_81], %258 {strides = array<i32>} : memref<16x32xbf16, #tpu.memory_space<vmem>>, vector<16x16xbf16>,
    %c0_82 = arith.constant 0 : index
    %c0_83 = arith.constant 0 : index
    %260 = vector.load %arg12[%c0_82, %c0_83] : memref<16x32xbf16, #tpu.memory_space<vmem>>, vector<16x32xbf16>
    %cst_84 = arith.constant dense<0.000000e+00> : vector<16x32xf32>
    %261 = tpu.matmul %2, %260, %cst_84 {dimension_numbers = #tpu.dot_dimension_numbers<[1], [0], [0], [1], [0, 0, 1, 1], [], []>} : vector<16x16xbf16>, vector<16x32xbf16>, vector<16x32xf32> -> vector<16x32xf32>
    %c0_85 = arith.constant 0 : index
    %c0_86 = arith.constant 0 : index
    %c0_87 = arith.constant 0 : index
    %262 = vector.load %arg10[%c0_85, %c0_86, %c0_87] : memref<1x16x32xf32, #tpu.memory_space<vmem>>, vector<1x16x32xf32>
    %263 = vector.shape_cast %262 : vector<1x16x32xf32> to vector<16x32xf32>
    %264 = vector.shape_cast %261 : vector<16x32xf32> to vector<1x16x32xf32>
    tpu.vector_store %arg10[%c0_85, %c0_86, %c0_87], %264 {strides = array<i32>} : memref<1x16x32xf32, #tpu.memory_space<vmem>>, vector<1x16x32xf32>,
    return
  }
  func.func @transform_0(%arg0: i32) -> i32 {
    %c0_i32 = arith.constant 0 : i32
    %c0_i32_0 = arith.constant 0 : i32
    return %c0_i32 : i32
  }
  func.func @transform_1(%arg0: i32) -> (i32, i32) {
    %c0_i32 = arith.constant 0 : i32
    %c0_i32_0 = arith.constant 0 : i32
    %c0_i32_1 = arith.constant 0 : i32
    return %c0_i32, %c0_i32_0 : i32, i32
  }
  func.func @transform_2(%arg0: i32) -> (i32, i32) {
    %c0_i32 = arith.constant 0 : i32
    %c0_i32_0 = arith.constant 0 : i32
    %c0_i32_1 = arith.constant 0 : i32
    return %c0_i32, %c0_i32_0 : i32, i32
  }
  func.func @transform_3(%arg0: i32) -> (i32, i32) {
    %c0_i32 = arith.constant 0 : i32
    %c0_i32_0 = arith.constant 0 : i32
    %c0_i32_1 = arith.constant 0 : i32
    return %c0_i32, %c0_i32_0 : i32, i32
  }
  func.func @transform_4(%arg0: i32) -> (i32, i32, i32) {
    %c0_i32 = arith.constant 0 : i32
    %c0_i32_0 = arith.constant 0 : i32
    %c0_i32_1 = arith.constant 0 : i32
    return %arg0, %c0_i32, %c0_i32_0 : i32, i32, i32
  }
  func.func @transform_5(%arg0: i32) -> (i32, i32, i32, i32) {
    %c0_i32 = arith.constant 0 : i32
    %c0_i32_0 = arith.constant 0 : i32
    %c0_i32_1 = arith.constant 0 : i32
    %c0_i32_2 = arith.constant 0 : i32
    return %arg0, %c0_i32, %c0_i32_0, %c0_i32_1 : i32, i32, i32, i32
  }
  func.func @transform_6(%arg0: i32) -> (i32, i32, i32, i32) {
    %c0_i32 = arith.constant 0 : i32
    %c0_i32_0 = arith.constant 0 : i32
    %c0_i32_1 = arith.constant 0 : i32
    %c0_i32_2 = arith.constant 0 : i32
    return %arg0, %c0_i32, %c0_i32_0, %c0_i32_1 : i32, i32, i32, i32
  }
  func.func @transform_7(%arg0: i32) -> (i32, i32) {
    %c0_i32 = arith.constant 0 : i32
    %c0_i32_0 = arith.constant 0 : i32
    %c0_i32_1 = arith.constant 0 : i32
    return %c0_i32, %c0_i32_0 : i32, i32
  }
  func.func @transform_8(%arg0: i32) -> (i32, i32) {
    %c0_i32 = arith.constant 0 : i32
    %c0_i32_0 = arith.constant 0 : i32
    %c0_i32_1 = arith.constant 0 : i32
    return %c0_i32, %c0_i32_0 : i32, i32
  }
  func.func @transform_9(%arg0: i32) -> (i32, i32, i32) {
    %c0_i32 = arith.constant 0 : i32
    %c0_i32_0 = arith.constant 0 : i32
    %c0_i32_1 = arith.constant 0 : i32
    return %arg0, %c0_i32, %c0_i32_0 : i32, i32, i32
  }
}

</mosaic_0001>

<llo_original>
// kernel: tpu_custom_call.1
$region0: #{tpu_custom_call.1}
  #allocation0 [shape = 'u32[]', space=smem, size = 0x4, offset = 0x4, fixed_abs, tag = 'smem constant byte address 0x4 - core index']
  #allocation1 [shape = 'u32[72,128]{1,0:T(1,128)}', space=vmem, size = 0x9000, scoped, tag = 'internal scratch']
  #allocation2 [shape = 'bf16[32,16]{1,0:T(8,128)(2,1)}', space=vmem, size = 0x2000, scoped, tag = 'scratch operand']
  #allocation3 [shape = 'bf16[16,32]{1,0:T(8,128)(2,1)}', space=vmem, size = 0x1000, scoped, tag = 'scratch operand']
  %s0 = inlined_call_operand.hbm [shape: s32[8], index: 0, kind: input, shape index: {}]
  %s1 = inlined_call_operand.hbm [shape: f32[2,16], index: 1, kind: input, shape index: {}]
  %s2 = inlined_call_operand.hbm [shape: f32[2,16], index: 2, kind: input, shape index: {}]
  %s3 = inlined_call_operand.vmem [shape: f32[2,2], index: 3, kind: input, shape index: {}]
  %s4 = inlined_call_operand.hbm [shape: s32[2,16,16], index: 4, kind: input, shape index: {}]
  %s5 = inlined_call_operand.hbm [shape: bf16[2,2,16,16], index: 5, kind: input, shape index: {}]
  %s6 = inlined_call_operand.hbm [shape: bf16[2,2,16,16], index: 6, kind: input, shape index: {}]
  %s7 = inlined_call_operand.hbm [shape: bf16[16,16], index: 7, kind: input, shape index: {}]
  %s8 = inlined_call_operand.hbm [shape: bf16[16,16], index: 8, kind: input, shape index: {}]
  %s9 = inlined_call_operand.hbm [shape: f32[2,16,32], index: 9, kind: output, shape index: {}]
  %s10 = sld [smem:[#allocation0]]
  $region105: #{tpu_custom_call.1} parent=0
    _
  %s12 = ssub.s32 1, %s10
  %s13 = scalar_select 0, %s12, %s10
  $region1: #{tpu_custom_call.1} parent=0
    #allocation4 [shape = 'u8[512]{0}', space=smem, size = 0x200, scoped, tag = 'input window, operand 0, single buffered']
    #allocation5 [shape = 's32[2]{0}', space=sflag, size = 0x8, scoped, tag = 'scoped memory for tpu_custom_call.1']
    #allocation6 [shape = 's32[2]{0}', space=sflag, size = 0x8, scoped, tag = 'scoped memory for tpu_custom_call.1']
    #allocation7 [shape = 's32[2]{0}', space=sflag, size = 0x8, scoped, tag = 'scoped memory for tpu_custom_call.1']
    #allocation8 [shape = 's32[2]{0}', space=sflag, size = 0x8, scoped, tag = 'scoped memory for tpu_custom_call.1']
    #allocation9 [shape = 'u8[1024]{0}', space=smem, size = 0x400, scoped, tag = 'input window, operand 1, single buffered']
    #allocation10 [shape = 's32[1]{0}', space=sflag, size = 0x4, scoped, tag = 'scoped memory for tpu_custom_call.1']
    #allocation11 [shape = 'u8[1024]{0}', space=smem, size = 0x400, scoped, tag = 'input window, operand 2, single buffered']
    #allocation12 [shape = 'u8[1024]{0}', space=smem, size = 0x400, scoped, tag = 'input window, operand 3, single buffered']
    #allocation13 [shape = 'u8[16384]{0}', space=vmem, size = 0x4000, scoped, tag = 'input window, operand 4']
    #allocation14 [shape = 'u8[16384]{0}', space=vmem, size = 0x4000, scoped, tag = 'input window, operand 5']
    #allocation15 [shape = 's32[2]{0}', space=sflag, size = 0x8, scoped, tag = 'scoped memory for tpu_custom_call.1']
    #allocation16 [shape = 'u8[16384]{0}', space=vmem, size = 0x4000, scoped, tag = 'input window, operand 6']
    #allocation17 [shape = 'u8[4096]{0}', space=vmem, size = 0x1000, scoped, tag = 'input window, operand 7, single buffered']
    #allocation18 [shape = 's32[1]{0}', space=sflag, size = 0x4, scoped, tag = 'scoped memory for tpu_custom_call.1']
    #allocation19 [shape = 'u8[4096]{0}', space=vmem, size = 0x1000, scoped, tag = 'input window, operand 8, single buffered']
    #allocation20 [shape = 'u8[16384]{0}', space=vmem, size = 0x4000, scoped, tag = 'output window, operand 0']
    %14 = vsyncpa [#allocation7], 0
    %15 = vsyncpa [#allocation10], 0
    %16 = vsyncpa [#allocation8], 0
    %17 = vsyncpa [#allocation5], 0
    %s18 = scalar_lea.sflag [#allocation5], 1
    %19 = vsyncpa %s18, 0
    %20 = vsyncpa [#allocation15], 0
    %s21 = scalar_lea.sflag [#allocation15], 1
    %22 = vsyncpa %s21, 0
    %23 = vsyncpa [#allocation18], 0
    %24 = vsyncpa [#allocation6], 0
    %s25 = scalar_lea.sflag [#allocation6], 1
    %26 = vsyncpa %s25, 0
    loop: start=0, step=1, limit=4
    $region2: #{tpu_custom_call.1} parent=1 // loop_pre_header
      _
    $region3: #{tpu_custom_call.1} parent=1 // loop_header
      %s28 = sphi 0, %s32
      %p29 = scmp.ge.s32.totalorder %s28, 4
      %s36 = sphi 0, %s36
      %s38 = sphi 0, %s36
      %s39 = sphi 0, %s38
      %s53 = sphi 0, %s39
      %s57 = sphi 0, %s57
      %s59 = sphi 0, %s57
      %s60 = sphi 0, %s59
      %s74 = sphi 0, %s60
      %s78 = sphi 0, %s78
      %s80 = sphi 0, %s78
      %s81 = sphi 0, %s80
      %s95 = sphi 0, %s81
      %s99 = sphi 0, %s99
      %s101 = sphi 0, %s99
      %s102 = sphi 0, %s101
      %s116 = sphi 0, %s102
      %s122 = sphi 0, %s124
      %s125 = sphi 0, %s122
      %s126 = sphi 0, %s125
      %s142 = sphi 0, %s126
      %s148 = sphi 0, %s150
      %s151 = sphi 0, %s148
      %s152 = sphi 0, %s151
      %s168 = sphi 0, %s152
      %s174 = sphi 0, %s176
      %s177 = sphi 0, %s174
      %s178 = sphi 0, %s177
      %s194 = sphi 0, %s178
      %s198 = sphi 0, %s198
      %s200 = sphi 0, %s198
      %s201 = sphi 0, %s200
      %s215 = sphi 0, %s201
      %s219 = sphi 0, %s219
      %s221 = sphi 0, %s219
      %s222 = sphi 0, %s221
      %s236 = sphi 0, %s222
      %s242 = sphi 0, %s244
      %s245 = sphi 0, %s242
      %s246 = sphi 0, %s245
      %s262 = sphi 0, %s246
    $region4: #{tpu_custom_call.1} parent=1 // loop_header_branch
      %31 = sbr.rel (%p29) target = $region8
    $region5: #{tpu_custom_call.1} parent=1 // loop_body
      %s33 = ssub.s32 %s28, 1
      %s34 = ssub.s32 %s28, 2
      %s35 = sadd.s32 %s28, 1
      %s37 = sadd.s32 %s36, 1
      %p40 = scmp.eq.s32.totalorder %s28, 1
      %p41 = scmp.ne.s32.totalorder %s36, %s38
      %p42 = scmp.eq.s32.totalorder %s28, 0
      %p43 = por %p41, %p42
      %p44 = scmp.ne.s32.totalorder %s36, %s38
      %p45 = scmp.eq.s32.totalorder %s33, 1
      %p46 = por %p44, %p45
      %p47 = scmp.ne.s32.totalorder %s38, %s39
      %p48 = scmp.eq.s32.totalorder %s33, 0
      %p49 = por %p47, %p48
      %p50 = scmp.ne.s32.totalorder %s38, %s39
      %p51 = scmp.eq.s32.totalorder %s34, 1
      %p52 = por %p50, %p51
      %p54 = scmp.ne.s32.totalorder %s39, %s53
      %p55 = scmp.eq.s32.totalorder %s34, 0
      %p56 = por %p54, %p55
      %s58 = sadd.s32 %s57, 1
      %p61 = scmp.eq.s32.totalorder %s28, 1
      %p62 = scmp.ne.s32.totalorder %s57, %s59
      %p63 = scmp.eq.s32.totalorder %s28, 0
      %p64 = por %p62, %p63
      %p65 = scmp.ne.s32.totalorder %s57, %s59
      %p66 = scmp.eq.s32.totalorder %s33, 1
      %p67 = por %p65, %p66
      %p68 = scmp.ne.s32.totalorder %s59, %s60
      %p69 = scmp.eq.s32.totalorder %s33, 0
      %p70 = por %p68, %p69
      %p71 = scmp.ne.s32.totalorder %s59, %s60
      %p72 = scmp.eq.s32.totalorder %s34, 1
      %p73 = por %p71, %p72
      %p75 = scmp.ne.s32.totalorder %s60, %s74
      %p76 = scmp.eq.s32.totalorder %s34, 0
      %p77 = por %p75, %p76
      %s79 = sadd.s32 %s78, 1
      %p82 = scmp.eq.s32.totalorder %s28, 1
      %p83 = scmp.ne.s32.totalorder %s78, %s80
      %p84 = scmp.eq.s32.totalorder %s28, 0
      %p85 = por %p83, %p84
      %p86 = scmp.ne.s32.totalorder %s78, %s80
      %p87 = scmp.eq.s32.totalorder %s33, 1
      %p88 = por %p86, %p87
      %p89 = scmp.ne.s32.totalorder %s80, %s81
      %p90 = scmp.eq.s32.totalorder %s33, 0
      %p91 = por %p89, %p90
      %p92 = scmp.ne.s32.totalorder %s80, %s81
      %p93 = scmp.eq.s32.totalorder %s34, 1
      %p94 = por %p92, %p93
      %p96 = scmp.ne.s32.totalorder %s81, %s95
      %p97 = scmp.eq.s32.totalorder %s34, 0
      %p98 = por %p96, %p97
      %s100 = sadd.s32 %s99, 1
      %p103 = scmp.eq.s32.totalorder %s28, 1
      %p104 = scmp.ne.s32.totalorder %s99, %s101
      %p105 = scmp.eq.s32.totalorder %s28, 0
      %p106 = por %p104, %p105
      %p107 = scmp.ne.s32.totalorder %s99, %s101
      %p108 = scmp.eq.s32.totalorder %s33, 1
      %p109 = por %p107, %p108
      %p110 = scmp.ne.s32.totalorder %s101, %s102
      %p111 = scmp.eq.s32.totalorder %s33, 0
      %p112 = por %p110, %p111
      %p113 = scmp.ne.s32.totalorder %s101, %s102
      %p114 = scmp.eq.s32.totalorder %s34, 1
      %p115 = por %p113, %p114
      %p117 = scmp.ne.s32.totalorder %s102, %s116
      %p118 = scmp.eq.s32.totalorder %s34, 0
      %p119 = por %p117, %p118
      %s120 = ssub.s32 %s28, %s35
      %p121 = scmp.eq.s32.totalorder %s120, 0
      %s123 = sadd.s32 %s122, 1
      %s124 = scalar_select %p121, %s122, %s123
      %p127 = pneg %p121
      %p128 = scmp.eq.s32.totalorder %s28, 1
      %p129 = por %p127, %p128
      %p130 = scmp.ne.s32.totalorder %s122, %s125
      %p131 = scmp.eq.s32.totalorder %s28, 0
      %p132 = por %p130, %p131
      %p133 = scmp.ne.s32.totalorder %s122, %s125
      %p134 = scmp.eq.s32.totalorder %s33, 1
      %p135 = por %p133, %p134
      %p136 = scmp.ne.s32.totalorder %s125, %s126
      %p137 = scmp.eq.s32.totalorder %s33, 0
      %p138 = por %p136, %p137
      %p139 = scmp.ne.s32.totalorder %s125, %s126
      %p140 = scmp.eq.s32.totalorder %s34, 1
      %p141 = por %p139, %p140
      %p143 = scmp.ne.s32.totalorder %s126, %s142
      %p144 = scmp.eq.s32.totalorder %s34, 0
      %p145 = por %p143, %p144
      %s146 = ssub.s32 %s28, %s35
      %p147 = scmp.eq.s32.totalorder %s146, 0
      %s149 = sadd.s32 %s148, 1
      %s150 = scalar_select %p147, %s148, %s149
      %p153 = pneg %p147
      %p154 = scmp.eq.s32.totalorder %s28, 1
      %p155 = por %p153, %p154
      %p156 = scmp.ne.s32.totalorder %s148, %s151
      %p157 = scmp.eq.s32.totalorder %s28, 0
      %p158 = por %p156, %p157
      %p159 = scmp.ne.s32.totalorder %s148, %s151
      %p160 = scmp.eq.s32.totalorder %s33, 1
      %p161 = por %p159, %p160
      %p162 = scmp.ne.s32.totalorder %s151, %s152
      %p163 = scmp.eq.s32.totalorder %s33, 0
      %p164 = por %p162, %p163
      %p165 = scmp.ne.s32.totalorder %s151, %s152
      %p166 = scmp.eq.s32.totalorder %s34, 1
      %p167 = por %p165, %p166
      %p169 = scmp.ne.s32.totalorder %s152, %s168
      %p170 = scmp.eq.s32.totalorder %s34, 0
      %p171 = por %p169, %p170
      %s172 = ssub.s32 %s28, %s35
      %p173 = scmp.eq.s32.totalorder %s172, 0
      %s175 = sadd.s32 %s174, 1
      %s176 = scalar_select %p173, %s174, %s175
      %p179 = pneg %p173
      %p180 = scmp.eq.s32.totalorder %s28, 1
      %p181 = por %p179, %p180
      %p182 = scmp.ne.s32.totalorder %s174, %s177
      %p183 = scmp.eq.s32.totalorder %s28, 0
      %p184 = por %p182, %p183
      %p185 = scmp.ne.s32.totalorder %s174, %s177
      %p186 = scmp.eq.s32.totalorder %s33, 1
      %p187 = por %p185, %p186
      %p188 = scmp.ne.s32.totalorder %s177, %s178
      %p189 = scmp.eq.s32.totalorder %s33, 0
      %p190 = por %p188, %p189
      %p191 = scmp.ne.s32.totalorder %s177, %s178
      %p192 = scmp.eq.s32.totalorder %s34, 1
      %p193 = por %p191, %p192
      %p195 = scmp.ne.s32.totalorder %s178, %s194
      %p196 = scmp.eq.s32.totalorder %s34, 0
      %p197 = por %p195, %p196
      %s199 = sadd.s32 %s198, 1
      %p202 = scmp.eq.s32.totalorder %s28, 1
      %p203 = scmp.ne.s32.totalorder %s198, %s200
      %p204 = scmp.eq.s32.totalorder %s28, 0
      %p205 = por %p203, %p204
      %p206 = scmp.ne.s32.totalorder %s198, %s200
      %p207 = scmp.eq.s32.totalorder %s33, 1
      %p208 = por %p206, %p207
      %p209 = scmp.ne.s32.totalorder %s200, %s201
      %p210 = scmp.eq.s32.totalorder %s33, 0
      %p211 = por %p209, %p210
      %p212 = scmp.ne.s32.totalorder %s200, %s201
      %p213 = scmp.eq.s32.totalorder %s34, 1
      %p214 = por %p212, %p213
      %p216 = scmp.ne.s32.totalorder %s201, %s215
      %p217 = scmp.eq.s32.totalorder %s34, 0
      %p218 = por %p216, %p217
      %s220 = sadd.s32 %s219, 1
      %p223 = scmp.eq.s32.totalorder %s28, 1
      %p224 = scmp.ne.s32.totalorder %s219, %s221
      %p225 = scmp.eq.s32.totalorder %s28, 0
      %p226 = por %p224, %p225
      %p227 = scmp.ne.s32.totalorder %s219, %s221
      %p228 = scmp.eq.s32.totalorder %s33, 1
      %p229 = por %p227, %p228
      %p230 = scmp.ne.s32.totalorder %s221, %s222
      %p231 = scmp.eq.s32.totalorder %s33, 0
      %p232 = por %p230, %p231
      %p233 = scmp.ne.s32.totalorder %s221, %s222
      %p234 = scmp.eq.s32.totalorder %s34, 1
      %p235 = por %p233, %p234
      %p237 = scmp.ne.s32.totalorder %s222, %s236
      %p238 = scmp.eq.s32.totalorder %s34, 0
      %p239 = por %p237, %p238
      %s240 = ssub.s32 %s28, %s35
      %p241 = scmp.eq.s32.totalorder %s240, 0
      %s243 = sadd.s32 %s242, 1
      %s244 = scalar_select %p241, %s242, %s243
      %p247 = pneg %p241
      %p248 = scmp.eq.s32.totalorder %s28, 1
      %p249 = por %p247, %p248
      %p250 = scmp.ne.s32.totalorder %s242, %s245
      %p251 = scmp.eq.s32.totalorder %s28, 0
      %p252 = por %p250, %p251
      %p253 = scmp.ne.s32.totalorder %s242, %s245
      %p254 = scmp.eq.s32.totalorder %s33, 1
      %p255 = por %p253, %p254
      %p256 = scmp.ne.s32.totalorder %s245, %s246
      %p257 = scmp.eq.s32.totalorder %s33, 0
      %p258 = por %p256, %p257
      %p259 = scmp.ne.s32.totalorder %s245, %s246
      %p260 = scmp.eq.s32.totalorder %s34, 1
      %p261 = por %p259, %p260
      %p263 = scmp.ne.s32.totalorder %s246, %s262
      %p264 = scmp.eq.s32.totalorder %s34, 0
      %p265 = por %p263, %p264
      %p266 = scmp.le.s32.totalorder 1, %s28
      %p267 = scmp.lt.s32.totalorder %s28, 3
      %p268 = pnand %p266, %p267
      %p269 = pneg %p268
      // Predicated region
      $region9: #{tpu_custom_call.1} parent=5 // pred_check
        _
      $region10: #{tpu_custom_call.1} parent=5 // pred_check_branch
        %271 = sbr.rel (%p268) target = $region12
      $region11: #{tpu_custom_call.1} parent=5 // pred_region
        %s272 = ssub.s32 %s28, 1
        // Predicated region
        $region13: #{tpu_custom_call.1} parent=11 // pred_check
          %p273 = pneg %p49
        $region14: #{tpu_custom_call.1} parent=11 // pred_check_branch
          %275 = sbr.rel (%p273) target = $region16
        $region15: #{tpu_custom_call.1} parent=11 // pred_region
          %277 = vsyncadd [#allocation7], 0
          %s279 = sshll.u32 %s0, 4
          %s280 = int_to_ptr.hbm [resolvable:$true] %s279
          %282 = dma.hbm_to_smem %s280, 16, [#allocation4], [#allocation7]
        $region16: #{tpu_custom_call.1} parent=11 // pred_fallthru
          _
        // Predicated region
        $region17: #{tpu_custom_call.1} parent=11 // pred_check
          %p283 = pneg %p70
        $region18: #{tpu_custom_call.1} parent=11 // pred_check_branch
          %285 = sbr.rel (%p283) target = $region20
        $region19: #{tpu_custom_call.1} parent=11 // pred_region
          %287 = vsyncadd [#allocation10], 0
          %s289 = sshll.u32 %s1, 4
          %s290 = int_to_ptr.hbm [resolvable:$true] %s289
          %292 = dma.hbm_to_smem %s290, 32, [#allocation9], [#allocation10]
        $region20: #{tpu_custom_call.1} parent=11 // pred_fallthru
          _
        // Predicated region
        $region21: #{tpu_custom_call.1} parent=11 // pred_check
          %p293 = pneg %p91
        $region22: #{tpu_custom_call.1} parent=11 // pred_check_branch
          %295 = sbr.rel (%p293) target = $region24
        $region23: #{tpu_custom_call.1} parent=11 // pred_region
          %297 = vsyncadd [#allocation10], 0
          %s299 = sshll.u32 %s2, 4
          %s300 = int_to_ptr.hbm [resolvable:$true] %s299
          %302 = dma.hbm_to_smem %s300, 32, [#allocation11], [#allocation10]
        $region24: #{tpu_custom_call.1} parent=11 // pred_fallthru
          _
        // Predicated region
        $region25: #{tpu_custom_call.1} parent=11 // pred_check
          %p303 = pneg %p112
        $region26: #{tpu_custom_call.1} parent=11 // pred_check_branch
          %305 = sbr.rel (%p303) target = $region28
        $region27: #{tpu_custom_call.1} parent=11 // pred_region
          %307 = vsyncadd [#allocation8], 0
          %s309 = sshll.u32 %s3, 4
          %s310 = int_to_ptr.vmem [resolvable:$true] %s309
          %312 = dma.vmem_to_smem %s310, 32, [#allocation12], [#allocation8]
        $region28: #{tpu_custom_call.1} parent=11 // pred_fallthru
          _
        // Predicated region
        $region29: #{tpu_custom_call.1} parent=11 // pred_check
          %p313 = pneg %p211
        $region30: #{tpu_custom_call.1} parent=11 // pred_check_branch
          %315 = sbr.rel (%p313) target = $region32
        $region31: #{tpu_custom_call.1} parent=11 // pred_region
          %317 = vsyncadd [#allocation18], 0
          %s318 = sshll.u32 %s7, 4
          %s319 = int_to_ptr.hbm [resolvable:$true] %s318
          %s320 = sshll.u32 [#allocation17], 4
          %s321 = int_to_ptr.vmem [resolvable:$true] %s320
          %326 = dma.hbm_to_vmem [thread:$0]  %s319, 128, %s321, [#allocation18], 64, 64, 4
        $region32: #{tpu_custom_call.1} parent=11 // pred_fallthru
          _
        // Predicated region
        $region33: #{tpu_custom_call.1} parent=11 // pred_check
          %p327 = pneg %p232
        $region34: #{tpu_custom_call.1} parent=11 // pred_check_branch
          %329 = sbr.rel (%p327) target = $region36
        $region35: #{tpu_custom_call.1} parent=11 // pred_region
          %331 = vsyncadd [#allocation18], 0
          %s332 = sshll.u32 %s8, 4
          %s333 = int_to_ptr.hbm [resolvable:$true] %s332
          %s334 = sshll.u32 [#allocation19], 4
          %s335 = int_to_ptr.vmem [resolvable:$true] %s334
          %340 = dma.hbm_to_vmem [thread:$0]  %s333, 128, %s335, [#allocation18], 64, 64, 4
        $region36: #{tpu_custom_call.1} parent=11 // pred_fallthru
          _
      $region12: #{tpu_custom_call.1} parent=5 // pred_fallthru
        _
      %p341 = scmp.lt.s32.totalorder %s28, 2
      // Predicated region
      $region37: #{tpu_custom_call.1} parent=5 // pred_check
        %p342 = pneg %p341
      $region38: #{tpu_custom_call.1} parent=5 // pred_check_branch
        %344 = sbr.rel (%p342) target = $region40
      $region39: #{tpu_custom_call.1} parent=5 // pred_region
        // Predicated region
        $region41: #{tpu_custom_call.1} parent=39 // pred_check
          %p345 = pneg %p132
        $region42: #{tpu_custom_call.1} parent=39 // pred_check_branch
          %347 = sbr.rel (%p345) target = $region44
        $region43: #{tpu_custom_call.1} parent=39 // pred_region
          %s348 = sand.u32 %s122, 1
          %s349 = scalar_lea.sflag [#allocation5], %s348
          %s350 = sand.u32 %s122, 1
          %s351 = smul.addr %s350, 16
          %s352 = scalar_lea.vmem [#allocation13], %s351
          %354 = vsyncadd %s349, 0
          %s355 = smul.addr %s28, 2
          %s356 = smul.addr %s355, 8
          %s357 = scalar_lea.hbm %s4, %s356
          %s358 = sshll.u32 %s357, 4
          %s359 = int_to_ptr.hbm [resolvable:$true] %s358
          %s360 = sshll.u32 %s352, 4
          %s361 = int_to_ptr.vmem [resolvable:$true] %s360
          %366 = dma.hbm_to_vmem [thread:$0]  %s359, 256, %s361, %s349, 128, 128, 8
        $region44: #{tpu_custom_call.1} parent=39 // pred_fallthru
          _
        // Predicated region
        $region45: #{tpu_custom_call.1} parent=39 // pred_check
          %p367 = pneg %p158
        $region46: #{tpu_custom_call.1} parent=39 // pred_check_branch
          %369 = sbr.rel (%p367) target = $region48
        $region47: #{tpu_custom_call.1} parent=39 // pred_region
          %s370 = sand.u32 %s28, 1
          %s371 = scalar_lea.sflag [#allocation15], %s370
          %s372 = sand.u32 %s148, 1
          %s373 = smul.addr %s372, 16
          %s374 = scalar_lea.vmem [#allocation14], %s373
          %376 = vsyncadd %s371, 0
          %s377 = smul.addr %s28, 4
          %s378 = smul.addr %s377, 4
          %s379 = scalar_lea.hbm %s5, %s378
          %s380 = sshll.u32 %s379, 4
          %s381 = int_to_ptr.hbm [resolvable:$true] %s380
          %s382 = sshll.u32 %s374, 4
          %s383 = int_to_ptr.vmem [resolvable:$true] %s382
          %388 = dma.hbm_to_vmem [thread:$0]  %s381, 256, %s383, %s371, 64, 64, 4
        $region48: #{tpu_custom_call.1} parent=39 // pred_fallthru
          _
        // Predicated region
        $region49: #{tpu_custom_call.1} parent=39 // pred_check
          %p389 = pneg %p184
        $region50: #{tpu_custom_call.1} parent=39 // pred_check_branch
          %391 = sbr.rel (%p389) target = $region52
        $region51: #{tpu_custom_call.1} parent=39 // pred_region
          %s392 = sand.u32 %s28, 1
          %s393 = scalar_lea.sflag [#allocation15], %s392
          %s394 = sand.u32 %s174, 1
          %s395 = smul.addr %s394, 16
          %s396 = scalar_lea.vmem [#allocation16], %s395
          %398 = vsyncadd %s393, 0
          %s399 = smul.addr %s28, 4
          %s400 = smul.addr %s399, 4
          %s401 = scalar_lea.hbm %s6, %s400
          %s402 = sshll.u32 %s401, 4
          %s403 = int_to_ptr.hbm [resolvable:$true] %s402
          %s404 = sshll.u32 %s396, 4
          %s405 = int_to_ptr.vmem [resolvable:$true] %s404
          %410 = dma.hbm_to_vmem [thread:$0]  %s403, 256, %s405, %s393, 64, 64, 4
        $region52: #{tpu_custom_call.1} parent=39 // pred_fallthru
          _
      $region40: #{tpu_custom_call.1} parent=5 // pred_fallthru
        _
      %p411 = scmp.le.s32.totalorder 1, %s28
      %p412 = scmp.lt.s32.totalorder %s28, 3
      %p413 = pnand %p411, %p412
      %p414 = pneg %p413
      // Predicated region
      $region53: #{tpu_custom_call.1} parent=5 // pred_check
        _
      $region54: #{tpu_custom_call.1} parent=5 // pred_check_branch
        %416 = sbr.rel (%p413) target = $region56
      $region55: #{tpu_custom_call.1} parent=5 // pred_region
        %s417 = ssub.s32 %s28, 1
        // Predicated region
        $region57: #{tpu_custom_call.1} parent=55 // pred_check
          %p418 = pneg %p49
        $region58: #{tpu_custom_call.1} parent=55 // pred_check_branch
          %420 = sbr.rel (%p418) target = $region60
        $region59: #{tpu_custom_call.1} parent=55 // pred_region
          %422 = dma.done [#allocation7], 16
        $region60: #{tpu_custom_call.1} parent=55 // pred_fallthru
          _
        // Predicated region
        $region61: #{tpu_custom_call.1} parent=55 // pred_check
          %p423 = pneg %p70
        $region62: #{tpu_custom_call.1} parent=55 // pred_check_branch
          %425 = sbr.rel (%p423) target = $region64
        $region63: #{tpu_custom_call.1} parent=55 // pred_region
          %427 = dma.done [#allocation10], 32
        $region64: #{tpu_custom_call.1} parent=55 // pred_fallthru
          _
        // Predicated region
        $region65: #{tpu_custom_call.1} parent=55 // pred_check
          %p428 = pneg %p91
        $region66: #{tpu_custom_call.1} parent=55 // pred_check_branch
          %430 = sbr.rel (%p428) target = $region68
        $region67: #{tpu_custom_call.1} parent=55 // pred_region
          %432 = dma.done [#allocation10], 32
        $region68: #{tpu_custom_call.1} parent=55 // pred_fallthru
          _
        // Predicated region
        $region69: #{tpu_custom_call.1} parent=55 // pred_check
          %p433 = pneg %p112
        $region70: #{tpu_custom_call.1} parent=55 // pred_check_branch
          %435 = sbr.rel (%p433) target = $region72
        $region71: #{tpu_custom_call.1} parent=55 // pred_region
          %437 = dma.done [#allocation8], 32
        $region72: #{tpu_custom_call.1} parent=55 // pred_fallthru
          _
        %s438 = sand.u32 %s125, 1
        %s439 = scalar_lea.sflag [#allocation5], %s438
        %s440 = sand.u32 %s125, 1
        %s441 = smul.addr %s440, 16
        %s442 = scalar_lea.vmem [#allocation13], %s441
        // Predicated region
        $region73: #{tpu_custom_call.1} parent=55 // pred_check
          %p443 = pneg %p138
        $region74: #{tpu_custom_call.1} parent=55 // pred_check_branch
          %445 = sbr.rel (%p443) target = $region76
        $region75: #{tpu_custom_call.1} parent=55 // pred_region
          %447 = dma.done %s439, 256
        $region76: #{tpu_custom_call.1} parent=55 // pred_fallthru
          _
        %s448 = sand.u32 %s33, 1
        %s449 = scalar_lea.sflag [#allocation15], %s448
        %s450 = sand.u32 %s151, 1
        %s451 = smul.addr %s450, 16
        %s452 = scalar_lea.vmem [#allocation14], %s451
        // Predicated region
        $region77: #{tpu_custom_call.1} parent=55 // pred_check
          %p453 = pneg %p164
        $region78: #{tpu_custom_call.1} parent=55 // pred_check_branch
          %455 = sbr.rel (%p453) target = $region80
        $region79: #{tpu_custom_call.1} parent=55 // pred_region
          %457 = dma.done %s449, 256
        $region80: #{tpu_custom_call.1} parent=55 // pred_fallthru
          _
        %s458 = sand.u32 %s33, 1
        %s459 = scalar_lea.sflag [#allocation15], %s458
        %s460 = sand.u32 %s177, 1
        %s461 = smul.addr %s460, 16
        %s462 = scalar_lea.vmem [#allocation16], %s461
        // Predicated region
        $region81: #{tpu_custom_call.1} parent=55 // pred_check
          %p463 = pneg %p190
        $region82: #{tpu_custom_call.1} parent=55 // pred_check_branch
          %465 = sbr.rel (%p463) target = $region84
        $region83: #{tpu_custom_call.1} parent=55 // pred_region
          %467 = dma.done %s459, 256
        $region84: #{tpu_custom_call.1} parent=55 // pred_fallthru
          _
        // Predicated region
        $region85: #{tpu_custom_call.1} parent=55 // pred_check
          %p468 = pneg %p211
        $region86: #{tpu_custom_call.1} parent=55 // pred_check_branch
          %470 = sbr.rel (%p468) target = $region88
        $region87: #{tpu_custom_call.1} parent=55 // pred_region
          %472 = dma.done [#allocation18], 128
        $region88: #{tpu_custom_call.1} parent=55 // pred_fallthru
          _
        // Predicated region
        $region89: #{tpu_custom_call.1} parent=55 // pred_check
          %p473 = pneg %p232
        $region90: #{tpu_custom_call.1} parent=55 // pred_check_branch
          %475 = sbr.rel (%p473) target = $region92
        $region91: #{tpu_custom_call.1} parent=55 // pred_region
          %477 = dma.done [#allocation18], 128
        $region92: #{tpu_custom_call.1} parent=55 // pred_fallthru
          _
        %478 = sfence
        %p479 = pneg %p49
        %p480 = pneg %p46
        %p481 = pneg %p70
        %p482 = pneg %p67
        %p483 = pneg %p91
        %p484 = pneg %p88
        %p485 = pneg %p112
        %p486 = pneg %p109
        %s487 = sand.u32 %s125, 1
        %s488 = scalar_lea.sflag [#allocation5], %s487
        %s489 = sand.u32 %s125, 1
        %s490 = smul.addr %s489, 16
        %s491 = scalar_lea.vmem [#allocation13], %s490
        %p492 = pneg %p138
        %p493 = pneg %p135
        %s494 = sand.u32 %s33, 1
        %s495 = scalar_lea.sflag [#allocation15], %s494
        %s496 = sand.u32 %s151, 1
        %s497 = smul.addr %s496, 16
        %s498 = scalar_lea.vmem [#allocation14], %s497
        %p499 = pneg %p164
        %p500 = pneg %p161
        %s501 = sand.u32 %s33, 1
        %s502 = scalar_lea.sflag [#allocation15], %s501
        %s503 = sand.u32 %s177, 1
        %s504 = smul.addr %s503, 16
        %s505 = scalar_lea.vmem [#allocation16], %s504
        %p506 = pneg %p190
        %p507 = pneg %p187
        %p508 = pneg %p211
        %p509 = pneg %p208
        %p510 = pneg %p232
        %p511 = pneg %p229
        %p512 = pneg %p258
        %p513 = pneg %p255
        %s514 = sand.u32 %s245, 1
        %s515 = scalar_lea.sflag [#allocation6], %s514
        %s516 = sand.u32 %s245, 1
        %s517 = smul.addr %s516, 16
        %s518 = scalar_lea.vmem [#allocation20], %s517
        %v520 = vld [vmem:[%s442] sm:$0xff]
        %v521 = vld [vmem:[%s442 + $0x8] sm:$0xff]
        %v522 = vld [vmem:[#allocation17] sm:$0xf]
        %v523 = vld [vmem:[#allocation17 + $0x4] sm:$0xf]
        %v524 = vld [vmem:[#allocation19] sm:$0xf]
        %v525 = vld [vmem:[#allocation19 + $0x4] sm:$0xf]
        %s526 = sld [smem:[#allocation4]]
        %v527 = vstv %s526
        %vm528 = vcmp.eq.s32.totalorder %v520, %v527
        %vm529 = vcmp.eq.s32.totalorder %v521, %v527
        %s530 = smul.u32 %s33, 128
        %s531 = sld [smem:[#allocation9 + %s530]]
        %v532 = vstv %s531
        %v533 = vsel %vm528, %v532, 0.0
        %v534 = vsel %vm529, %v532, 0.0
        %s535 = sld [smem:[#allocation11 + %s530]]
        %v536 = vstv %s535
        %v537 = vsel %vm528, %v536, 0.0
        %v538 = vsel %vm529, %v536, 0.0
        %s539 = sld [smem:[#allocation4 + $0x1]]
        %v540 = vstv %s539
        %vm541 = vcmp.eq.s32.totalorder %v520, %v540
        %vm542 = vcmp.eq.s32.totalorder %v521, %v540
        %s543 = sadd.s32 %s530, 2
        %s544 = sld [smem:[#allocation9 + %s543]]
        %v545 = vstv %s544
        %v546 = vsel %vm541, %v545, %v533
        %v547 = vsel %vm542, %v545, %v534
        %s548 = sld [smem:[#allocation11 + %s543]]
        %v549 = vstv %s548
        %v550 = vsel %vm541, %v549, %v537
        %v551 = vsel %vm542, %v549, %v538
        %s552 = sld [smem:[#allocation4 + $0x2]]
        %v553 = vstv %s552
        %vm554 = vcmp.eq.s32.totalorder %v520, %v553
        %vm555 = vcmp.eq.s32.totalorder %v521, %v553
        %s556 = sadd.s32 %s530, 4
        %s557 = sld [smem:[#allocation9 + %s556]]
        %v558 = vstv %s557
        %v559 = vsel %vm554, %v558, %v546
        %v560 = vsel %vm555, %v558, %v547
        %s561 = sld [smem:[#allocation11 + %s556]]
        %v562 = vstv %s561
        %v563 = vsel %vm554, %v562, %v550
        %v564 = vsel %vm555, %v562, %v551
        %s565 = sld [smem:[#allocation4 + $0x3]]
        %v566 = vstv %s565
        %vm567 = vcmp.eq.s32.totalorder %v520, %v566
        %vm568 = vcmp.eq.s32.totalorder %v521, %v566
        %s569 = sadd.s32 %s530, 6
        %s570 = sld [smem:[#allocation9 + %s569]]
        %v571 = vstv %s570
        %v572 = vsel %vm567, %v571, %v559
        %v573 = vsel %vm568, %v571, %v560
        %s574 = sld [smem:[#allocation11 + %s569]]
        %v575 = vstv %s574
        %v576 = vsel %vm567, %v575, %v563
        %v577 = vsel %vm568, %v575, %v564
        %s578 = sld [smem:[#allocation4 + $0x4]]
        %v579 = vstv %s578
        %vm580 = vcmp.eq.s32.totalorder %v520, %v579
        %vm581 = vcmp.eq.s32.totalorder %v521, %v579
        %s582 = sadd.s32 %s530, 8
        %s583 = sld [smem:[#allocation9 + %s582]]
        %v584 = vstv %s583
        %v585 = vsel %vm580, %v584, %v572
        %v586 = vsel %vm581, %v584, %v573
        %s587 = sld [smem:[#allocation11 + %s582]]
        %v588 = vstv %s587
        %v589 = vsel %vm580, %v588, %v576
        %v590 = vsel %vm581, %v588, %v577
        %s591 = sld [smem:[#allocation4 + $0x5]]
        %v592 = vstv %s591
        %vm593 = vcmp.eq.s32.totalorder %v520, %v592
        %vm594 = vcmp.eq.s32.totalorder %v521, %v592
        %s595 = sadd.s32 %s530, 10
        %s596 = sld [smem:[#allocation9 + %s595]]
        %v597 = vstv %s596
        %v598 = vsel %vm593, %v597, %v585
        %v599 = vsel %vm594, %v597, %v586
        %s600 = sld [smem:[#allocation11 + %s595]]
        %v601 = vstv %s600
        %v602 = vsel %vm593, %v601, %v589
        %v603 = vsel %vm594, %v601, %v590
        %s604 = sld [smem:[#allocation4 + $0x6]]
        %v605 = vstv %s604
        %vm606 = vcmp.eq.s32.totalorder %v520, %v605
        %vm607 = vcmp.eq.s32.totalorder %v521, %v605
        %s608 = sadd.s32 %s530, 12
        %s609 = sld [smem:[#allocation9 + %s608]]
        %v610 = vstv %s609
        %v611 = vsel %vm606, %v610, %v598
        %v612 = vsel %vm607, %v610, %v599
        %s613 = sld [smem:[#allocation11 + %s608]]
        %v614 = vstv %s613
        %v615 = vsel %vm606, %v614, %v602
        %v616 = vsel %vm607, %v614, %v603
        %s617 = sld [smem:[#allocation4 + $0x7]]
        %v618 = vstv %s617
        %vm619 = vcmp.eq.s32.totalorder %v520, %v618
        %vm620 = vcmp.eq.s32.totalorder %v521, %v618
        %s621 = sadd.s32 %s530, 14
        %s622 = sld [smem:[#allocation9 + %s621]]
        %v623 = vstv %s622
        %v624 = vsel %vm619, %v623, %v611
        %v625 = vsel %vm620, %v623, %v612
        %s626 = sld [smem:[#allocation11 + %s621]]
        %v627 = vstv %s626
        %v628 = vsel %vm619, %v627, %v615
        %v629 = vsel %vm620, %v627, %v616
        %v630 = vld [vmem:[%s452] sm:$0xf]
        %v631 = vld [vmem:[%s452 + $0x4] sm:$0xf]
        %v632 = vunpack.c.l.bf16 %v630
        %v633 = vunpack.c.l.bf16 %v631
        %v634 = vmul.f32 %v628, %v632
        %v635 = vmul.f32 %v629, %v633
        %v636 = vadd.f32 %v624, %v634
        %v637 = vadd.f32 %v625, %v635
        %v638 = vld [vmem:[%s462] sm:$0xf]
        %v639 = vld [vmem:[%s462 + $0x4] sm:$0xf]
        %v640 = vunpack.c.l.bf16 %v638
        %v641 = vunpack.c.l.bf16 %v639
        %v642 = vmul.f32 %v636, %v640
        %v643 = vmul.f32 %v637, %v641
        %vm644 = vcmask 130048
        %v645 = vsel %vm644, %v642, inf
        %646 = vmin.xlane.f32.xlu0 %v645
        %v647 = vpop.xlane.xlu0 %646
        %v648 = vsel %vm644, %v643, inf
        %649 = vmin.xlane.f32.xlu0 %v648
        %v650 = vpop.xlane.xlu0 %649
        %v651 = vmin.f32 %v647, %v650
        %v652 = vrot.slane %v651, 4
        %v653 = vmin.f32 %v651, %v652
        %v654 = vrot.slane %v653, 2
        %v655 = vmin.f32 %v653, %v654
        %v656 = vrot.slane %v655, 1
        %v657 = vmin.f32 %v655, %v656
        %v658 = vsel %vm644, %v642, -inf
        %659 = vmax.xlane.f32.xlu0 %v658
        %v660 = vpop.xlane.xlu0 %659
        %v661 = vsel %vm644, %v643, -inf
        %662 = vmax.xlane.f32.xlu0 %v661
        %v663 = vpop.xlane.xlu0 %662
        %v664 = vmax.f32 %v660, %v663
        %v665 = vrot.slane %v664, 4
        %v666 = vmax.f32 %v664, %v665
        %v667 = vrot.slane %v666, 2
        %v668 = vmax.f32 %v666, %v667
        %v669 = vrot.slane %v668, 1
        %v670 = vmax.f32 %v668, %v669
        %v671 = vsub.f32 %v642, %v657
        %v672 = vsub.f32 %v643, %v657
        %v673 = vsub.f32 %v670, %v657
        %v674 = vadd.f32 %v673, 1e-06
        %v675 = vrcp.pop %v674
        %v676 = vmul.f32 %v674, %v675
        %v677 = vsub.f32 1.0, %v676
        %v678 = vmul.f32 %v675, %v677
        %v679 = vadd.f32 %v675, %v678
        %vm680 = vweird.f32 %v674
        %vm681 = vweird.f32 %v675
        %vm682 = vmor %vm680, %vm681
        %v683 = vsel %vm682, %v675, %v679
        %v684 = vand.u32 2147483647, %v674
        %vm685 = vcmp.eq.f32.partialorder %v684, 8.507059e+37
        %v686 = vand.u32 %v674, 2147483648
        %v687 = vor.u32 1.1754944e-38, %v686
        %v688 = vsel %vm685, %v687, %v683
        %v689 = vmul.f32 %v671, %v688
        %v690 = vmul.f32 %v672, %v688
        %s691 = sld [smem:[#allocation12 + %s530]]
        %v692 = vmax.f32 %v689, 1e-09
        %v693 = vmax.f32 %v690, 1e-09
        %v694 = vlog2.pop %v692
        %v695 = vmul.f32 %v694, 0.6931472
        %v696 = vlog2.pop %v693
        %v697 = vmul.f32 %v696, 0.6931472
        %v698 = vstv %s691
        %v699 = vmul.f32 %v698, %v695
        %v700 = vmul.f32 %v698, %v697
        %v701 = vmul.f32 %v699, 1.442695
        %v702 = vpow.pop %v701
        %v703 = vmul.f32 %v700, 1.442695
        %v704 = vpow.pop %v703
        %v705 = vpack.c.bf16 %v702, %v702
        %v706 = vpack.c.bf16 %v704, %v704
        %vm707 = vcmask 125952
        %708 = vst.msk [vmem:[#allocation2] sm:$0xf] %vm707, %v705
        %709 = vst.msk [vmem:[#allocation2 + $0x4] sm:$0xf] %vm707, %v706
        %s710 = sld [smem:[#allocation4]]
        %v711 = vstv %s710
        %vm712 = vcmp.eq.s32.totalorder %v520, %v711
        %vm713 = vcmp.eq.s32.totalorder %v521, %v711
        %s714 = sadd.s32 %s530, 1
        %s715 = sld [smem:[#allocation9 + %s714]]
        %v716 = vstv %s715
        %v717 = vsel %vm712, %v716, 0.0
        %v718 = vsel %vm713, %v716, 0.0
        %s719 = sld [smem:[#allocation11 + %s714]]
        %v720 = vstv %s719
        %v721 = vsel %vm712, %v720, 0.0
        %v722 = vsel %vm713, %v720, 0.0
        %s723 = sld [smem:[#allocation4 + $0x1]]
        %v724 = vstv %s723
        %vm725 = vcmp.eq.s32.totalorder %v520, %v724
        %vm726 = vcmp.eq.s32.totalorder %v521, %v724
        %s727 = sadd.s32 %s530, 3
        %s728 = sld [smem:[#allocation9 + %s727]]
        %v729 = vstv %s728
        %v730 = vsel %vm725, %v729, %v717
        %v731 = vsel %vm726, %v729, %v718
        %s732 = sld [smem:[#allocation11 + %s727]]
        %v733 = vstv %s732
        %v734 = vsel %vm725, %v733, %v721
        %v735 = vsel %vm726, %v733, %v722
        %s736 = sld [smem:[#allocation4 + $0x2]]
        %v737 = vstv %s736
        %vm738 = vcmp.eq.s32.totalorder %v520, %v737
        %vm739 = vcmp.eq.s32.totalorder %v521, %v737
        %s740 = sadd.s32 %s530, 5
        %s741 = sld [smem:[#allocation9 + %s740]]
        %v742 = vstv %s741
        %v743 = vsel %vm738, %v742, %v730
        %v744 = vsel %vm739, %v742, %v731
        %s745 = sld [smem:[#allocation11 + %s740]]
        %v746 = vstv %s745
        %v747 = vsel %vm738, %v746, %v734
        %v748 = vsel %vm739, %v746, %v735
        %s749 = sld [smem:[#allocation4 + $0x3]]
        %v750 = vstv %s749
        %vm751 = vcmp.eq.s32.totalorder %v520, %v750
        %vm752 = vcmp.eq.s32.totalorder %v521, %v750
        %s753 = sadd.s32 %s530, 7
        %s754 = sld [smem:[#allocation9 + %s753]]
        %v755 = vstv %s754
        %v756 = vsel %vm751, %v755, %v743
        %v757 = vsel %vm752, %v755, %v744
        %s758 = sld [smem:[#allocation11 + %s753]]
        %v759 = vstv %s758
        %v760 = vsel %vm751, %v759, %v747
        %v761 = vsel %vm752, %v759, %v748
        %s762 = sld [smem:[#allocation4 + $0x4]]
        %v763 = vstv %s762
        %vm764 = vcmp.eq.s32.totalorder %v520, %v763
        %vm765 = vcmp.eq.s32.totalorder %v521, %v763
        %s766 = sadd.s32 %s530, 9
        %s767 = sld [smem:[#allocation9 + %s766]]
        %v768 = vstv %s767
        %v769 = vsel %vm764, %v768, %v756
        %v770 = vsel %vm765, %v768, %v757
        %s771 = sld [smem:[#allocation11 + %s766]]
        %v772 = vstv %s771
        %v773 = vsel %vm764, %v772, %v760
        %v774 = vsel %vm765, %v772, %v761
        %s775 = sld [smem:[#allocation4 + $0x5]]
        %v776 = vstv %s775
        %vm777 = vcmp.eq.s32.totalorder %v520, %v776
        %vm778 = vcmp.eq.s32.totalorder %v521, %v776
        %s779 = sadd.s32 %s530, 11
        %s780 = sld [smem:[#allocation9 + %s779]]
        %v781 = vstv %s780
        %v782 = vsel %vm777, %v781, %v769
        %v783 = vsel %vm778, %v781, %v770
        %s784 = sld [smem:[#allocation11 + %s779]]
        %v785 = vstv %s784
        %v786 = vsel %vm777, %v785, %v773
        %v787 = vsel %vm778, %v785, %v774
        %s788 = sld [smem:[#allocation4 + $0x6]]
        %v789 = vstv %s788
        %vm790 = vcmp.eq.s32.totalorder %v520, %v789
        %vm791 = vcmp.eq.s32.totalorder %v521, %v789
        %s792 = sadd.s32 %s530, 13
        %s793 = sld [smem:[#allocation9 + %s792]]
        %v794 = vstv %s793
        %v795 = vsel %vm790, %v794, %v782
        %v796 = vsel %vm791, %v794, %v783
        %s797 = sld [smem:[#allocation11 + %s792]]
        %v798 = vstv %s797
        %v799 = vsel %vm790, %v798, %v786
        %v800 = vsel %vm791, %v798, %v787
        %s801 = sld [smem:[#allocation4 + $0x7]]
        %v802 = vstv %s801
        %vm803 = vcmp.eq.s32.totalorder %v520, %v802
        %vm804 = vcmp.eq.s32.totalorder %v521, %v802
        %s805 = sadd.s32 %s530, 15
        %s806 = sld [smem:[#allocation9 + %s805]]
        %v807 = vstv %s806
        %v808 = vsel %vm803, %v807, %v795
        %v809 = vsel %vm804, %v807, %v796
        %s810 = sld [smem:[#allocation11 + %s805]]
        %v811 = vstv %s810
        %v812 = vsel %vm803, %v811, %v799
        %v813 = vsel %vm804, %v811, %v800
        %s814 = scalar_lea.vmem %s452, 8 [#allocation14]
        %v815 = vld [vmem:[%s814] sm:$0xf]
        %v816 = vld [vmem:[%s814 + $0x4] sm:$0xf]
        %v817 = vunpack.c.l.bf16 %v815
        %v818 = vunpack.c.l.bf16 %v816
        %v819 = vmul.f32 %v812, %v817
        %v820 = vmul.f32 %v813, %v818
        %v821 = vadd.f32 %v808, %v819
        %v822 = vadd.f32 %v809, %v820
        %s823 = scalar_lea.vmem %s462, 8 [#allocation16]
        %v824 = vld [vmem:[%s823] sm:$0xf]
        %v825 = vld [vmem:[%s823 + $0x4] sm:$0xf]
        %v826 = vunpack.c.l.bf16 %v824
        %v827 = vunpack.c.l.bf16 %v825
        %v828 = vmul.f32 %v821, %v826
        %v829 = vmul.f32 %v822, %v827
        %v830 = vsel %vm644, %v828, inf
        %831 = vmin.xlane.f32.xlu0 %v830
        %v832 = vpop.xlane.xlu0 %831
        %v833 = vsel %vm644, %v829, inf
        %834 = vmin.xlane.f32.xlu0 %v833
        %v835 = vpop.xlane.xlu0 %834
        %v836 = vmin.f32 %v832, %v835
        %v837 = vrot.slane %v836, 4
        %v838 = vmin.f32 %v836, %v837
        %v839 = vrot.slane %v838, 2
        %v840 = vmin.f32 %v838, %v839
        %v841 = vrot.slane %v840, 1
        %v842 = vmin.f32 %v840, %v841
        %v843 = vsel %vm644, %v828, -inf
        %844 = vmax.xlane.f32.xlu0 %v843
        %v845 = vpop.xlane.xlu0 %844
        %v846 = vsel %vm644, %v829, -inf
        %847 = vmax.xlane.f32.xlu0 %v846
        %v848 = vpop.xlane.xlu0 %847
        %v849 = vmax.f32 %v845, %v848
        %v850 = vrot.slane %v849, 4
        %v851 = vmax.f32 %v849, %v850
        %v852 = vrot.slane %v851, 2
        %v853 = vmax.f32 %v851, %v852
        %v854 = vrot.slane %v853, 1
        %v855 = vmax.f32 %v853, %v854
        %v856 = vsub.f32 %v828, %v842
        %v857 = vsub.f32 %v829, %v842
        %v858 = vsub.f32 %v855, %v842
        %v859 = vadd.f32 %v858, 1e-06
        %v860 = vrcp.pop %v859
        %v861 = vmul.f32 %v859, %v860
        %v862 = vsub.f32 1.0, %v861
        %v863 = vmul.f32 %v860, %v862
        %v864 = vadd.f32 %v860, %v863
        %vm865 = vweird.f32 %v859
        %vm866 = vweird.f32 %v860
        %vm867 = vmor %vm865, %vm866
        %v868 = vsel %vm867, %v860, %v864
        %v869 = vand.u32 2147483647, %v859
        %vm870 = vcmp.eq.f32.partialorder %v869, 8.507059e+37
        %v871 = vand.u32 %v859, 2147483648
        %v872 = vor.u32 1.1754944e-38, %v871
        %v873 = vsel %vm870, %v872, %v868
        %v874 = vmul.f32 %v856, %v873
        %v875 = vmul.f32 %v857, %v873
        %s876 = sld [smem:[#allocation12 + %s714]]
        %v877 = vmax.f32 %v874, 1e-09
        %v878 = vmax.f32 %v875, 1e-09
        %v879 = vlog2.pop %v877
        %v880 = vmul.f32 %v879, 0.6931472
        %v881 = vlog2.pop %v878
        %v882 = vmul.f32 %v881, 0.6931472
        %v883 = vstv %s876
        %v884 = vmul.f32 %v883, %v880
        %v885 = vmul.f32 %v883, %v882
        %v886 = vmul.f32 %v884, 1.442695
        %v887 = vpow.pop %v886
        %v888 = vmul.f32 %v885, 1.442695
        %v889 = vpow.pop %v888
        %v890 = vpack.c.bf16 %v887, %v887
        %v891 = vpack.c.bf16 %v889, %v889
        %892 = vst.msk [vmem:[#allocation2 + $0x8] sm:$0xf] %vm707, %v890
        %893 = vst.msk [vmem:[#allocation2 + $0xc] sm:$0xf] %vm707, %v891
        %v894 = vld [vmem:[#allocation2] sm:$0xf]
        %v895 = vld [vmem:[#allocation2 + $0x4] sm:$0xf]
        %v896 = vld [vmem:[#allocation2 + $0x8] sm:$0xf]
        %v897 = vld [vmem:[#allocation2 + $0xc] sm:$0xf]
        %v902 = vunpack.c.l.b16 %v894
        %v903 = vunpack.c.l.b16 %v895
        %v904 = vunpack.c.l.b16 %v896
        %v905 = vunpack.c.l.b16 %v897
        %v906 = vpack.c.b16 %v903, %v902
        %v907 = vpack.c.b16 %v905, %v904
        %v910 = vunpack.c.l.b16 %v524
        %v911 = vunpack.c.l.b16 %v525
        %v912 = vpack.c.b16 %v911, %v910
        %v915 = vsel %vm644, %v906, 0
        %v918 = vsel %vm644, %v907, 0
        %920 = vmatpush.bf16.msra.mxu0 0
        %921 = vmatpush.bf16.msra.mxu0 0
        %922 = vmatpush.bf16.msra.mxu0 0
        %923 = vmatpush.bf16.msra.mxu0 0
        %924 = vmatpush.bf16.msra.mxu0 0
        %925 = vmatpush.bf16.msra.mxu0 0
        %926 = vmatpush.bf16.msra.mxu0 0
        %927 = vmatpush.bf16.msra.mxu0 %v912
        %928 = vmatmul.bf16.gmra.mxu0 %v915
        %v929 = vpop.f32.mrf.mxu0
        %v930 = vadd.f32 0.0, %v929
        %v931 = vpop.f32.mrf.mxu0
        %v932 = vadd.f32 0.0, %v931
        %933 = vmatmul.bf16.gmra.mxu0 %v918
        %v934 = vpop.f32.mrf.mxu0
        %v935 = vadd.f32 0.0, %v934
        %v936 = vpop.f32.mrf.mxu0
        %v937 = vadd.f32 0.0, %v936
        %938 = vdwg.mxu0
        %v939 = vpack.c.bf16 %v930, %v930
        %v940 = vpack.c.bf16 %v932, %v932
        %941 = vst.msk [vmem:[#allocation3] sm:$0xf] %vm707, %v939
        %942 = vst.msk [vmem:[#allocation3 + $0x4] sm:$0xf] %vm707, %v940
        %v943 = vpack.c.bf16 %v935, %v935
        %v944 = vpack.c.bf16 %v937, %v937
        %947 = vrot.lane.b32.xlu0 %v943, 16
        %v948 = vpop.permute.xlu0 %947
        %949 = vrot.lane.b32.xlu0 %v944, 16
        %v950 = vpop.permute.xlu0 %949
        %vm953 = vcmask 257152
        %954 = vst.msk [vmem:[#allocation3] sm:$0xf] %vm953, %v948
        %955 = vst.msk [vmem:[#allocation3 + $0x4] sm:$0xf] %vm953, %v950
        %v956 = vld [vmem:[#allocation3] sm:$0xf]
        %v957 = vld [vmem:[#allocation3 + $0x4] sm:$0xf]
        %v960 = vunpack.c.l.b16 %v522
        %v961 = vunpack.c.l.b16 %v523
        %v962 = vpack.c.b16 %v961, %v960
        %v965 = vunpack.c.l.b16 %v956
        %v966 = vunpack.c.l.b16 %v957
        %v967 = vpack.c.b16 %v966, %v965
        %v970 = vsel %vm644, %v962, 0
        %972 = vmatpush.bf16.msra.mxu0 0
        %973 = vmatpush.bf16.msra.mxu0 0
        %974 = vmatpush.bf16.msra.mxu0 0
        %975 = vmatpush.bf16.msra.mxu0 0
        %976 = vmatpush.bf16.msra.mxu0 0
        %977 = vmatpush.bf16.msra.mxu0 0
        %978 = vmatpush.bf16.msra.mxu0 0
        %979 = vmatpush.bf16.msra.mxu0 %v967
        %980 = vmatmul.bf16.gmra.mxu0 %v970
        %v981 = vpop.f32.mrf.mxu0
        %v982 = vadd.f32 0.0, %v981
        %v983 = vpop.f32.mrf.mxu0
        %v984 = vadd.f32 0.0, %v983
        %985 = vdwg.mxu0
        %vm986 = vcmask 261120
        %987 = vst.msk [vmem:[%s518] sm:$0xff] %vm986, %v982
        %988 = vst.msk [vmem:[%s518 + $0x8] sm:$0xff] %vm986, %v984
        %s989 = sand.u32 %s245, 1
        %s990 = scalar_lea.sflag [#allocation6], %s989
        %s991 = sand.u32 %s245, 1
        %s992 = smul.addr %s991, 16
        %s993 = scalar_lea.vmem [#allocation20], %s992
        // Predicated region
        $region93: #{tpu_custom_call.1} parent=55 // pred_check
          %p994 = pneg %p255
        $region94: #{tpu_custom_call.1} parent=55 // pred_check_branch
          %996 = sbr.rel (%p994) target = $region96
        $region95: #{tpu_custom_call.1} parent=55 // pred_region
          %998 = vsyncadd %s990, 0
          %s999 = smul.addr %s33, 2
          %s1000 = smul.addr %s999, 8
          %s1001 = scalar_lea.hbm %s9, %s1000
          %s1002 = sshll.u32 %s993, 4
          %s1003 = int_to_ptr.vmem [resolvable:$true] %s1002
          %s1004 = sshll.u32 %s1001, 4
          %s1005 = int_to_ptr.hbm [resolvable:$true] %s1004
          %1010 = dma.vmem_to_hbm [thread:$0]  %s1003, 256, %s1005, %s990, 128, 128, 8
        $region96: #{tpu_custom_call.1} parent=55 // pred_fallthru
          _
      $region56: #{tpu_custom_call.1} parent=5 // pred_fallthru
        _
      %p1011 = scmp.le.s32.totalorder 2, %s28
      // Predicated region
      $region97: #{tpu_custom_call.1} parent=5 // pred_check
        %p1012 = pneg %p1011
      $region98: #{tpu_custom_call.1} parent=5 // pred_check_branch
        %1014 = sbr.rel (%p1012) target = $region100
      $region99: #{tpu_custom_call.1} parent=5 // pred_region
        %s1015 = ssub.s32 %s28, 2
        // Predicated region
        $region101: #{tpu_custom_call.1} parent=99 // pred_check
          %p1016 = pneg %p261
        $region102: #{tpu_custom_call.1} parent=99 // pred_check_branch
          %1018 = sbr.rel (%p1016) target = $region104
        $region103: #{tpu_custom_call.1} parent=99 // pred_region
          %s1019 = sand.u32 %s246, 1
          %s1020 = scalar_lea.sflag [#allocation6], %s1019
          %s1021 = sand.u32 %s246, 1
          %s1022 = smul.addr %s1021, 16
          %s1023 = scalar_lea.vmem [#allocation20], %s1022
          %1025 = dma.done %s1020, 256
        $region104: #{tpu_custom_call.1} parent=99 // pred_fallthru
          _
      $region100: #{tpu_custom_call.1} parent=5 // pred_fallthru
        _
    $region6: #{tpu_custom_call.1} parent=1 // loop_footer
      %s32 = sadd.s32 1, %s28
    $region7: #{tpu_custom_call.1} parent=1 // loop_footer_branch
      %27 = sbr.rel target = $region3
    $region8: #{tpu_custom_call.1} parent=1 // loop_exit
      _
    %1026 = vsyncpa [#allocation5], 1
    %s1027 = scalar_lea.sflag [#allocation5], 1
    %1028 = vsyncpa %s1027, 1
    %1029 = vsyncpa [#allocation15], 1
    %s1030 = scalar_lea.sflag [#allocation15], 1
    %1031 = vsyncpa %s1030, 1
    %1032 = vsyncpa [#allocation18], 1
    %1033 = vsyncpa [#allocation6], 1
    %s1034 = scalar_lea.sflag [#allocation6], 1
    %1035 = vsyncpa %s1034, 1
    %1036 = vsyncpa [#allocation7], 1
    %s1037 = scalar_lea.sflag [#allocation7], 1
    %1038 = vsyncpa %s1037, 1
    %1039 = vsyncpa [#allocation10], 1
    %1040 = vsyncpa [#allocation8], 1
    %s1041 = scalar_lea.sflag [#allocation8], 1
    %1042 = vsyncpa %s1041, 1

</llo_original>
